<compile_context>
chip_gen: v6e
topology: v6e:2x2x1
jax: 0.10.0
libtpu: 0.0.40
codegen_flags: <defaults>
</compile_context>

<pallas_src>
import jax
import jax.numpy as jnp
import numpy as np
from jax.experimental import pallas as pl
from jax.experimental.pallas import tpu as pltpu

EPS = 1e-5
LANES = 128


# ------------------------------------------------------------------- kernels --

def _dw_pw_kernel(taps_ref, dww_ref, dwb_ref, pww_ref, pwb_ref, sp_ref, st_ref):
    """Pass 1: depthwise 3x3/stride-2 + pointwise 1x1 on one lane-dense tile;
    accumulates BN1 per-channel/per-lane (sum, sumsq) partials per core."""
    cin = taps_ref.shape[1]

    # Depthwise: 9 pre-shifted lane-dense tap planes x per-channel scalar
    # weights (pre-broadcast to 128 lanes host-side).  3 independent
    # accumulators break the serial vmul+vadd chain (no f32 FMA on v5e/v6e).
    dacc = [None, None, None]
    for t in range(9):
        term = taps_ref[t].astype(jnp.float32) * dww_ref[t]   # (Cin, TR, 128)
        k = t % 3
        dacc[k] = term if dacc[k] is None else dacc[k] + term
    acc = dacc[0] + dacc[1] + dacc[2] + dwb_ref[...]           # (Cin, TR, 128)

    # Pointwise 1x1: channel counts are tiny (4/8) -> VPU broadcast-MACs.
    # TODO(synk): switch to an MXU matmul path when Cin/Cout grow past ~32.
    n_acc = min(2, cin)
    pacc = [None] * n_acc
    for i in range(cin):
        term = acc[i][None, :, :] * pww_ref[i]                 # (Cout, TR, 128)
        k = i % n_acc
        pacc[k] = term if pacc[k] is None else pacc[k] + term
    sp = pacc[0]
    for a in pacc[1:]:
        sp = sp + a
    sp = sp + pwb_ref[...]
    sp_ref[...] = sp.astype(sp_ref.dtype)

    # BN1 batch statistics: single-pass per-lane sum / sumsq partials, kept
    # resident across the sequential step axis; one slab per (mega)core.
    @pl.when(pl.program_id(1) == 0)
    def _():
        st_ref[...] = jnp.zeros_like(st_ref)
    st_ref[0] = st_ref[0] + jnp.sum(sp, axis=1)
    st_ref[1] = st_ref[1] + jnp.sum(sp * sp, axis=1)


def _bn1_cat_conv_kernel(sp_ref, x_ref, s1_ref, t1_ref, w2_ref, c2b_ref,
                         op_ref, st_ref):
    """Pass 2: BN1(folded affine)+ReLU, cat([x, side]) 1x1 conv as one fused
    MAC chain; accumulates BN2 (sum, sumsq) partials per core."""
    cout = op_ref.shape[0]
    n_acc = min(4, 2 * cout)
    cacc = [None] * n_acc
    for j in range(cout):                                   # x half of concat
        xj = x_ref[j].astype(jnp.float32)[None, :, :]
        term = xj * w2_ref[j]
        k = j % n_acc
        cacc[k] = term if cacc[k] is None else cacc[k] + term
    for j in range(cout):                                   # side half (BN1+ReLU)
        sj = jnp.maximum(
            sp_ref[j].astype(jnp.float32) * s1_ref[j] + t1_ref[j], 0.0)
        term = sj[None, :, :] * w2_ref[cout + j]
        k = (cout + j) % n_acc
        cacc[k] = term if cacc[k] is None else cacc[k] + term
    out = cacc[0]
    for a in cacc[1:]:
        out = out + a
    out = out + c2b_ref[...]
    op_ref[...] = out.astype(op_ref.dtype)

    @pl.when(pl.program_id(1) == 0)
    def _():
        st_ref[...] = jnp.zeros_like(st_ref)
    st_ref[0] = st_ref[0] + jnp.sum(out, axis=1)
    st_ref[1] = st_ref[1] + jnp.sum(out * out, axis=1)


def _bn2_relu_kernel(op_ref, s2_ref, t2_ref, o_ref):
    """Pass 3: BN2 folded affine + ReLU."""
    o_ref[...] = jnp.maximum(
        op_ref[...].astype(jnp.float32) * s2_ref[...] + t2_ref[...], 0.0
    ).astype(o_ref.dtype)


# --------------------------------------------------------------- host helpers --

def _build_taps(side, ho, wo, dtype):
    """(N, Cin, H, W) -> (9, Cin, N*ho*wo): 9 pre-shifted, lane-dense stride-2
    tap planes of the zero-padded input:
        tap[3*ky+kx][c, flat(n,r,col)] = pad(side)[n, c, 2r+ky, 2col+kx].
    ~2.25x the input in HBM, but every tap is a unit-stride plane so the
    kernel needs no shifts and stores are unmasked/lane-dense."""
    n, cin, h, w = side.shape
    s = jnp.transpose(side.astype(dtype), (1, 0, 2, 3))         # (Cin, N, H, W)
    s = jnp.pad(s, ((0, 0), (0, 0), (1, 2 * ho - h), (1, 2 * wo - w)))
    planes = []
    for ky in range(3):
        for kx in range(3):
            planes.append(s[:, :, ky:ky + 2 * ho:2, kx:kx + 2 * wo:2])
    taps = jnp.stack(planes, axis=0)                            # (9,Cin,N,ho,wo)
    return taps.reshape(9, cin, n * ho * wo)


def _vmem_budget():
    """One scoped-VMEM budget per chip: ~48 MiB on v7x (64 MiB physical),
    ~96 MiB on v5e/v6e (128 MiB physical)."""
    try:
        cap = int(pltpu.get_tpu_info().vmem_capacity_bytes)
    except Exception:                                  # non-TPU / older jax
        cap = 64 << 20
    return int(min(max(cap * 3 // 4, 16 << 20), 100 << 20))


def _pick_tile(n_rows, row_bytes, budget):
    """Largest multiple-of-8 divisor of n_rows whose pipelined footprint
    (double-buffered blocks + f32 intermediates) fits inside `budget`."""
    avail = int(max(budget - (4 << 20), budget // 2) * 0.85)
    cap = max(8, avail // max(row_bytes, 1))
    best, tr = 0, 8
    lim = min(n_rows, cap)
    while tr <= lim:
        if n_rows % tr == 0:
            best = tr
        tr += 8
    if best == 0:
        # n_rows < 8 or no multiple-of-8 divisor: one full block per step.
        # TODO(synk): mask ragged row tiles instead of falling back like this.
        best = n_rows
    return best


def _stats_to_affine(stats, gamma, beta, count):
    """Fold training-mode BatchNorm into per-channel scale/shift.
    stats: (2*n_cores, Cout, 128) interleaved per-core (sum, sumsq) partials."""
    s = jnp.sum(stats[0::2], axis=(0, 2))
    ss = jnp.sum(stats[1::2], axis=(0, 2))
    mean = s / count
    # TODO(synk): single-pass E[x^2]-E[x]^2 in f32 can lose precision for very
    # large N*Ho*Wo; use a compensated/mean-offset accumulation if the stats
    # must match PyTorch BatchNorm bit-closely.
    var = jnp.maximum(ss / count - mean * mean, 0.0)   # biased var (training)
    scale = gamma * jax.lax.rsqrt(var + EPS)
    shift = beta - mean * scale
    return scale.reshape(-1, 1, 1), shift.reshape(-1, 1, 1)


def init_params(key, cin, cout):
    """Random parameters in the layouts the kernels expect.

    PyTorch correspondence:
      depthwise.weight (Cin,1,3,3)    -> dw_w[3*ky+kx, c, 0, 0] = w[c, 0, ky, kx]
      pointwise.weight (Cout,Cin,1,1) -> pw_w[i, o, 0, 0]       = w[o, i]
      sideconv2.weight (Cout,2C,1,1)  -> w2[j, o, 0, 0]         = w[o, j]
    """
    ks = jax.random.split(key, 8)
    p = {}
    p["dw_w"] = 0.1 * jax.random.normal(ks[0], (9, cin, 1, 1), jnp.float32)
    p["dw_b"] = 0.1 * jax.random.normal(ks[1], (cin, 1, 1), jnp.float32)
    p["pw_w"] = 0.1 * jax.random.normal(ks[2], (cin, cout, 1, 1), jnp.float32)
    p["pw_b"] = 0.1 * jax.random.normal(ks[3], (cout, 1, 1), jnp.float32)
    p["g1"] = 1.0 + 0.1 * jax.random.normal(ks[4], (cout,), jnp.float32)
    p["b1"] = 0.1 * jax.random.normal(ks[5], (cout,), jnp.float32)
    p["w2"] = 0.1 * jax.random.normal(ks[6], (2 * cout, cout, 1, 1), jnp.float32)
    p["c2b"] = 0.1 * jax.random.normal(ks[7], (cout, 1, 1), jnp.float32)
    p["g2"] = jnp.ones((cout,), jnp.float32)
    p["b2"] = jnp.zeros((cout,), jnp.float32)
    return p


# -------------------------------------------------------------------- wrapper --

def side_conv2d(x, side, params, *, stream_dtype=jnp.bfloat16, tile_rows=None):
    """x: (N, Cout, Ho, Wo); side: (N, Cin, H, W) NCHW -> (N, Cout, Ho, Wo).

    Matches torch SideConv2d.forward with BatchNorm in training mode (batch
    statistics).  Activations stream HBM<->VMEM in `stream_dtype` (bf16 by
    default) with f32 accumulation; pass stream_dtype=jnp.float32 for exact f32.
    """
    n, cin, h, w = side.shape
    cout = params["pw_b"].shape[0]
    ho = (h - 1) // 2 + 1
    wo = (w - 1) // 2 + 1
    assert x.shape == (n, cout, ho, wo), (x.shape, (n, cout, ho, wo))
    m = n * ho * wo                                  # elements/channel (BN count)
    # TODO(synk): pad + mask the flattened spatial axis when it is not a
    # multiple of 128 lanes (not needed for power-of-two UNet shapes).
    assert m % LANES == 0, f"N*Ho*Wo={m} must be a multiple of {LANES}"
    r = m // LANES                                   # lane-dense row count
    sb = jnp.dtype(stream_dtype).itemsize
    ob = jnp.dtype(x.dtype).itemsize

    # ---- layout plumbing (no arithmetic): lane-dense (C, R, 128) slabs ----
    taps = _build_taps(side, ho, wo, stream_dtype).reshape(9, cin, r, LANES)
    x_rows = jnp.transpose(x, (1, 0, 2, 3)).reshape(cout, r, LANES).astype(stream_dtype)

    # tiny per-channel params, pre-broadcast along the 128-lane dim only.
    lane = lambda a: jnp.broadcast_to(a.astype(jnp.float32),
                                      a.shape[:-1] + (LANES,))
    dw_w, dw_b = lane(params["dw_w"]), lane(params["dw_b"])
    pw_w, pw_b = lane(params["pw_w"]), lane(params["pw_b"])
    w2, c2b = lane(params["w2"]), lane(params["c2b"])

    # ---- per-pass row tiles tied to one per-chip VMEM budget ----
    budget = _vmem_budget()
    row1 = LANES * (2 * (9 * cin + cout) * sb + 4 * (4 * cin + 4 * cout))
    row2 = LANES * (2 * 3 * cout * sb + 4 * 6 * cout)
    row3 = LANES * (2 * cout * (sb + ob) + 4 * 2 * cout)
    if tile_rows is not None:
        assert r % tile_rows == 0 and (tile_rows % 8 == 0 or tile_rows == r)
        tr1 = tr2 = tr3 = tile_rows
    else:
        tr1, tr2, tr3 = (_pick_tile(r, rb, budget) for rb in (row1, row2, row3))

    def act_shape(dt):
        return jax.ShapeDtypeStruct((cout, r, LANES), dt)

    def act_spec(tr, steps):
        return pl.BlockSpec((cout, tr, LANES),
                            lambda c, i: (0, c * steps + i, 0))

    def _full(a, two_axis=True):
        nd = a.ndim
        if two_axis:
            return pl.BlockSpec(a.shape, lambda c, i, _n=nd: (0,) * _n)
        return pl.BlockSpec(a.shape, lambda i, _n=nd: (0,) * _n)

    def _core_split(tr):
        steps = r // tr
        nc = 2 if (steps >= 2 and steps % 2 == 0) else 1
        return nc, steps // nc

    seq_params = pltpu.CompilerParams(
        dimension_semantics=("parallel", "arbitrary"),
        vmem_limit_bytes=budget)

    # ---- pass 1: depthwise 3x3/s2 + pointwise 1x1 conv, BN1 sum/sumsq ----
    nc1, steps1 = _core_split(tr1)
    side_pre, stats1 = pl.pallas_call(
        _dw_pw_kernel,
        grid=(nc1, steps1),
        in_specs=[pl.BlockSpec((9, cin, tr1, LANES),
                               lambda c, i, _s=steps1: (0, 0, c * _s + i, 0)),
                  _full(dw_w), _full(dw_b), _full(pw_w), _full(pw_b)],
        out_shape=(act_shape(stream_dtype),
                   jax.ShapeDtypeStruct((2 * nc1, cout, LANES), jnp.float32)),
        out_specs=(act_spec(tr1, steps1),
                   pl.BlockSpec((2, cout, LANES), lambda c, i: (c, 0, 0))),
        compiler_params=seq_params,
        cost_estimate=pl.CostEstimate(
            flops=2 * m * cin * (9 + cout), transcendentals=0,
            bytes_accessed=sb * m * (9 * cin + cout)),
    )(taps, dw_w, dw_b, pw_w, pw_b)

    s1, t1 = _stats_to_affine(stats1, params["g1"], params["b1"], m)
    s1, t1 = lane(s1), lane(t1)

    # ---- pass 2: BN1+ReLU, cat([x, side]) 1x1 conv, BN2 sum/sumsq ----
    nc2, steps2 = _core_split(tr2)
    out_pre, stats2 = pl.pallas_call(
        _bn1_cat_conv_kernel,
        grid=(nc2, steps2),
        in_specs=[act_spec(tr2, steps2), act_spec(tr2, steps2),
                  _full(s1), _full(t1), _full(w2), _full(c2b)],
        out_shape=(act_shape(stream_dtype),
                   jax.ShapeDtypeStruct((2 * nc2, cout, LANES), jnp.float32)),
        out_specs=(act_spec(tr2, steps2),
                   pl.BlockSpec((2, cout, LANES), lambda c, i: (c, 0, 0))),
        compiler_params=seq_params,
        cost_estimate=pl.CostEstimate(
            flops=2 * m * cout * (2 * cout + 2), transcendentals=0,
            bytes_accessed=sb * 3 * m * cout),
    )(side_pre, x_rows, s1, t1, w2, c2b)

    s2, t2 = _stats_to_affine(stats2, params["g2"], params["b2"], m)
    s2, t2 = lane(s2), lane(t2)

    # ---- pass 3: BN2 affine + ReLU (row-parallel, megacore-shardable) ----
    out_rows = pl.pallas_call(
        _bn2_relu_kernel,
        grid=(r // tr3,),
        in_specs=[pl.BlockSpec((cout, tr3, LANES), lambda i: (0, i, 0)),
                  _full(s2, two_axis=False), _full(t2, two_axis=False)],
        out_shape=act_shape(x.dtype),
        out_specs=pl.BlockSpec((cout, tr3, LANES), lambda i: (0, i, 0)),
        compiler_params=pltpu.CompilerParams(
            dimension_semantics=("parallel",),
            vmem_limit_bytes=budget),
        cost_estimate=pl.CostEstimate(
            flops=3 * m * cout, transcendentals=0,
            bytes_accessed=(sb + ob) * m * cout),
    )(out_pre, s2, t2)

    return out_rows.reshape(cout, n, ho, wo).transpose(1, 0, 2, 3)   # NCHW


# ------------------------------------------------------------ pure-JAX reference

def side_conv2d_ref(x, side, p):
    """f32 reference of SideConv2d.forward (BatchNorm in training mode)."""
    cin = side.shape[1]
    hi = jax.lax.Precision.HIGHEST
    w_dw = p["dw_w"][:, :, 0, 0].T.reshape(cin, 1, 3, 3)
    s = jax.lax.conv_general_dilated(
        side, w_dw, window_strides=(2, 2), padding=((1, 1), (1, 1)),
        dimension_numbers=("NCHW", "OIHW", "NCHW"), feature_group_count=cin,
        precision=hi)
    s = s + p["dw_b"][:, 0, 0][None, :, None, None]
    s = jnp.einsum("nchw,co->nohw", s, p["pw_w"][:, :, 0, 0], precision=hi)
    s = s + p["pw_b"][:, 0, 0][None, :, None, None]

    def bn_relu(y, g, b):
        mu = y.mean(axis=(0, 2, 3), keepdims=True)
        var = ((y - mu) ** 2).mean(axis=(0, 2, 3), keepdims=True)
        yn = (y - mu) * jax.lax.rsqrt(var + EPS)
        return jnp.maximum(yn * g[None, :, None, None] + b[None, :, None, None],
                           0.0)

    s = bn_relu(s, p["g1"], p["b1"])
    z = jnp.concatenate([x, s], axis=1)
    out = jnp.einsum("njhw,jo->nohw", z, p["w2"][:, :, 0, 0], precision=hi)
    out = out + p["c2b"][:, 0, 0][None, :, None, None]
    return bn_relu(out, p["g2"], p["b2"])


if __name__ == "__main__":
    key = jax.random.PRNGKey(0)
    kx, ks, kp, kx2, ks2 = jax.random.split(key, 5)

    fwd = jax.jit(side_conv2d, static_argnames=("stream_dtype", "tile_rows"))

    # Case 1: small shape, f32 streaming -> tight check against the pure-JAX
    # reference (validates tap alignment / layouts / BN statistics).
    N, Cin, Cout, H, W = 2, 4, 8, 16, 16
    side = jax.random.normal(ks, (N, Cin, H, W), jnp.float32)
    x = jax.random.normal(kx, (N, Cout, H // 2, W // 2), jnp.float32)
    params = init_params(kp, Cin, Cout)
    out = fwd(x, side, params, stream_dtype=jnp.float32)
    jax.block_until_ready(out)
    np.testing.assert_allclose(np.asarray(out),
                               np.asarray(side_conv2d_ref(x, side, params)),
                               rtol=1e-3, atol=1e-3)

    # Case 2: larger shape, default bf16 streaming, forced row tiling so the
    # cross-tile and per-core BN-stat accumulation paths are exercised.
    N2, H2, W2 = 4, 64, 64
    side2 = jax.random.normal(ks2, (N2, Cin, H2, W2), jnp.float32)
    x2 = jax.random.normal(kx2, (N2, Cout, H2 // 2, W2 // 2), jnp.float32)
    out2 = fwd(x2, side2, params, tile_rows=8)
    jax.block_until_ready(out2)
    np.testing.assert_allclose(np.asarray(out2),
                               np.asarray(side_conv2d_ref(x2, side2, params)),
                               rtol=1e-1, atol=1e-1)

    assert out.shape == (N, Cout, H // 2, W // 2) and out.dtype == jnp.float32
    assert out2.shape == (N2, Cout, H2 // 2, W2 // 2)
    print("KERNEL_OK")
</pallas_src>

<mosaic_0001>
module attributes {stable_mosaic.version = 11 : i64} {
  func.func @_dw_pw_kernel(%arg0: i32, %arg1: i32, %arg2: memref<9x4x1x128xf32, #tpu.memory_space<vmem>>, %arg3: memref<9x4x1x128xf32, #tpu.memory_space<vmem>>, %arg4: memref<4x1x128xf32, #tpu.memory_space<vmem>>, %arg5: memref<4x8x1x128xf32, #tpu.memory_space<vmem>>, %arg6: memref<8x1x128xf32, #tpu.memory_space<vmem>>, %arg7: memref<8x1x128xf32, #tpu.memory_space<vmem>>, %arg8: memref<2x8x128xf32, #tpu.memory_space<vmem>>) attributes {dimension_semantics = [#tpu.dimension_semantics<parallel>, #tpu.dimension_semantics<arbitrary>], iteration_bounds = array<i64: 1, 1>, scalar_prefetch = 0 : i64, scratch_operands = 0 : i64, tpu.core_type = #tpu.core_type<tc>, window_params = [{transform_indices = @transform_0, window_bounds = array<i64: 9, 4, 1, 128>}, {pipeline_mode = #tpu.pipeline_mode<synchronous>, transform_indices = @transform_1, window_bounds = array<i64: 9, 4, 1, 128>}, {pipeline_mode = #tpu.pipeline_mode<synchronous>, transform_indices = @transform_2, window_bounds = array<i64: 4, 1, 128>}, {pipeline_mode = #tpu.pipeline_mode<synchronous>, transform_indices = @transform_3, window_bounds = array<i64: 4, 8, 1, 128>}, {pipeline_mode = #tpu.pipeline_mode<synchronous>, transform_indices = @transform_4, window_bounds = array<i64: 8, 1, 128>}, {transform_indices = @transform_5, window_bounds = array<i64: 8, 1, 128>}, {transform_indices = @transform_6, window_bounds = array<i64: 2, 8, 128>}]} {
    %c0 = arith.constant 0 : index
    %c0_0 = arith.constant 0 : index
    %c0_1 = arith.constant 0 : index
    %c0_2 = arith.constant 0 : index
    %0 = vector.load %arg2[%c0, %c0_0, %c0_1, %c0_2] : memref<9x4x1x128xf32, #tpu.memory_space<vmem>>, vector<1x4x1x128xf32>
    %1 = vector.shape_cast %0 : vector<1x4x1x128xf32> to vector<4x1x128xf32>
    %c0_3 = arith.constant 0 : index
    %c0_4 = arith.constant 0 : index
    %c0_5 = arith.constant 0 : index
    %c0_6 = arith.constant 0 : index
    %2 = vector.load %arg3[%c0_3, %c0_4, %c0_5, %c0_6] : memref<9x4x1x128xf32, #tpu.memory_space<vmem>>, vector<1x4x1x128xf32>
    %3 = vector.shape_cast %2 : vector<1x4x1x128xf32> to vector<4x1x128xf32>
    %4 = arith.mulf %1, %3 : vector<4x1x128xf32>
    %c1 = arith.constant 1 : index
    %c0_7 = arith.constant 0 : index
    %c0_8 = arith.constant 0 : index
    %c0_9 = arith.constant 0 : index
    %5 = vector.load %arg2[%c1, %c0_7, %c0_8, %c0_9] : memref<9x4x1x128xf32, #tpu.memory_space<vmem>>, vector<1x4x1x128xf32>
    %6 = vector.shape_cast %5 : vector<1x4x1x128xf32> to vector<4x1x128xf32>
    %c1_10 = arith.constant 1 : index
    %c0_11 = arith.constant 0 : index
    %c0_12 = arith.constant 0 : index
    %c0_13 = arith.constant 0 : index
    %7 = vector.load %arg3[%c1_10, %c0_11, %c0_12, %c0_13] : memref<9x4x1x128xf32, #tpu.memory_space<vmem>>, vector<1x4x1x128xf32>
    %8 = vector.shape_cast %7 : vector<1x4x1x128xf32> to vector<4x1x128xf32>
    %9 = arith.mulf %6, %8 : vector<4x1x128xf32>
    %c2 = arith.constant 2 : index
    %c0_14 = arith.constant 0 : index
    %c0_15 = arith.constant 0 : index
    %c0_16 = arith.constant 0 : index
    %10 = vector.load %arg2[%c2, %c0_14, %c0_15, %c0_16] : memref<9x4x1x128xf32, #tpu.memory_space<vmem>>, vector<1x4x1x128xf32>
    %11 = vector.shape_cast %10 : vector<1x4x1x128xf32> to vector<4x1x128xf32>
    %c2_17 = arith.constant 2 : index
    %c0_18 = arith.constant 0 : index
    %c0_19 = arith.constant 0 : index
    %c0_20 = arith.constant 0 : index
    %12 = vector.load %arg3[%c2_17, %c0_18, %c0_19, %c0_20] : memref<9x4x1x128xf32, #tpu.memory_space<vmem>>, vector<1x4x1x128xf32>
    %13 = vector.shape_cast %12 : vector<1x4x1x128xf32> to vector<4x1x128xf32>
    %14 = arith.mulf %11, %13 : vector<4x1x128xf32>
    %c3 = arith.constant 3 : index
    %c0_21 = arith.constant 0 : index
    %c0_22 = arith.constant 0 : index
    %c0_23 = arith.constant 0 : index
    %15 = vector.load %arg2[%c3, %c0_21, %c0_22, %c0_23] : memref<9x4x1x128xf32, #tpu.memory_space<vmem>>, vector<1x4x1x128xf32>
    %16 = vector.shape_cast %15 : vector<1x4x1x128xf32> to vector<4x1x128xf32>
    %c3_24 = arith.constant 3 : index
    %c0_25 = arith.constant 0 : index
    %c0_26 = arith.constant 0 : index
    %c0_27 = arith.constant 0 : index
    %17 = vector.load %arg3[%c3_24, %c0_25, %c0_26, %c0_27] : memref<9x4x1x128xf32, #tpu.memory_space<vmem>>, vector<1x4x1x128xf32>
    %18 = vector.shape_cast %17 : vector<1x4x1x128xf32> to vector<4x1x128xf32>
    %19 = arith.mulf %16, %18 : vector<4x1x128xf32>
    %20 = arith.addf %4, %19 : vector<4x1x128xf32>
    %c4 = arith.constant 4 : index
    %c0_28 = arith.constant 0 : index
    %c0_29 = arith.constant 0 : index
    %c0_30 = arith.constant 0 : index
    %21 = vector.load %arg2[%c4, %c0_28, %c0_29, %c0_30] : memref<9x4x1x128xf32, #tpu.memory_space<vmem>>, vector<1x4x1x128xf32>
    %22 = vector.shape_cast %21 : vector<1x4x1x128xf32> to vector<4x1x128xf32>
    %c4_31 = arith.constant 4 : index
    %c0_32 = arith.constant 0 : index
    %c0_33 = arith.constant 0 : index
    %c0_34 = arith.constant 0 : index
    %23 = vector.load %arg3[%c4_31, %c0_32, %c0_33, %c0_34] : memref<9x4x1x128xf32, #tpu.memory_space<vmem>>, vector<1x4x1x128xf32>
    %24 = vector.shape_cast %23 : vector<1x4x1x128xf32> to vector<4x1x128xf32>
    %25 = arith.mulf %22, %24 : vector<4x1x128xf32>
    %26 = arith.addf %9, %25 : vector<4x1x128xf32>
    %c5 = arith.constant 5 : index
    %c0_35 = arith.constant 0 : index
    %c0_36 = arith.constant 0 : index
    %c0_37 = arith.constant 0 : index
    %27 = vector.load %arg2[%c5, %c0_35, %c0_36, %c0_37] : memref<9x4x1x128xf32, #tpu.memory_space<vmem>>, vector<1x4x1x128xf32>
    %28 = vector.shape_cast %27 : vector<1x4x1x128xf32> to vector<4x1x128xf32>
    %c5_38 = arith.constant 5 : index
    %c0_39 = arith.constant 0 : index
    %c0_40 = arith.constant 0 : index
    %c0_41 = arith.constant 0 : index
    %29 = vector.load %arg3[%c5_38, %c0_39, %c0_40, %c0_41] : memref<9x4x1x128xf32, #tpu.memory_space<vmem>>, vector<1x4x1x128xf32>
    %30 = vector.shape_cast %29 : vector<1x4x1x128xf32> to vector<4x1x128xf32>
    %31 = arith.mulf %28, %30 : vector<4x1x128xf32>
    %32 = arith.addf %14, %31 : vector<4x1x128xf32>
    %c6 = arith.constant 6 : index
    %c0_42 = arith.constant 0 : index
    %c0_43 = arith.constant 0 : index
    %c0_44 = arith.constant 0 : index
    %33 = vector.load %arg2[%c6, %c0_42, %c0_43, %c0_44] : memref<9x4x1x128xf32, #tpu.memory_space<vmem>>, vector<1x4x1x128xf32>
    %34 = vector.shape_cast %33 : vector<1x4x1x128xf32> to vector<4x1x128xf32>
    %c6_45 = arith.constant 6 : index
    %c0_46 = arith.constant 0 : index
    %c0_47 = arith.constant 0 : index
    %c0_48 = arith.constant 0 : index
    %35 = vector.load %arg3[%c6_45, %c0_46, %c0_47, %c0_48] : memref<9x4x1x128xf32, #tpu.memory_space<vmem>>, vector<1x4x1x128xf32>
    %36 = vector.shape_cast %35 : vector<1x4x1x128xf32> to vector<4x1x128xf32>
    %37 = arith.mulf %34, %36 : vector<4x1x128xf32>
    %38 = arith.addf %20, %37 : vector<4x1x128xf32>
    %c7 = arith.constant 7 : index
    %c0_49 = arith.constant 0 : index
    %c0_50 = arith.constant 0 : index
    %c0_51 = arith.constant 0 : index
    %39 = vector.load %arg2[%c7, %c0_49, %c0_50, %c0_51] : memref<9x4x1x128xf32, #tpu.memory_space<vmem>>, vector<1x4x1x128xf32>
    %40 = vector.shape_cast %39 : vector<1x4x1x128xf32> to vector<4x1x128xf32>
    %c7_52 = arith.constant 7 : index
    %c0_53 = arith.constant 0 : index
    %c0_54 = arith.constant 0 : index
    %c0_55 = arith.constant 0 : index
    %41 = vector.load %arg3[%c7_52, %c0_53, %c0_54, %c0_55] : memref<9x4x1x128xf32, #tpu.memory_space<vmem>>, vector<1x4x1x128xf32>
    %42 = vector.shape_cast %41 : vector<1x4x1x128xf32> to vector<4x1x128xf32>
    %43 = arith.mulf %40, %42 : vector<4x1x128xf32>
    %44 = arith.addf %26, %43 : vector<4x1x128xf32>
    %c8 = arith.constant 8 : index
    %c0_56 = arith.constant 0 : index
    %c0_57 = arith.constant 0 : index
    %c0_58 = arith.constant 0 : index
    %45 = vector.load %arg2[%c8, %c0_56, %c0_57, %c0_58] : memref<9x4x1x128xf32, #tpu.memory_space<vmem>>, vector<1x4x1x128xf32>
    %46 = vector.shape_cast %45 : vector<1x4x1x128xf32> to vector<4x1x128xf32>
    %c8_59 = arith.constant 8 : index
    %c0_60 = arith.constant 0 : index
    %c0_61 = arith.constant 0 : index
    %c0_62 = arith.constant 0 : index
    %47 = vector.load %arg3[%c8_59, %c0_60, %c0_61, %c0_62] : memref<9x4x1x128xf32, #tpu.memory_space<vmem>>, vector<1x4x1x128xf32>
    %48 = vector.shape_cast %47 : vector<1x4x1x128xf32> to vector<4x1x128xf32>
    %49 = arith.mulf %46, %48 : vector<4x1x128xf32>
    %50 = arith.addf %32, %49 : vector<4x1x128xf32>
    %51 = arith.addf %38, %44 : vector<4x1x128xf32>
    %52 = arith.addf %51, %50 : vector<4x1x128xf32>
    %c0_63 = arith.constant 0 : index
    %c0_64 = arith.constant 0 : index
    %c0_65 = arith.constant 0 : index
    %53 = vector.load %arg4[%c0_63, %c0_64, %c0_65] : memref<4x1x128xf32, #tpu.memory_space<vmem>>, vector<4x1x128xf32>
    %54 = arith.addf %52, %53 : vector<4x1x128xf32>
    %55 = vector.extract_strided_slice %54 {offsets = [0, 0, 0], sizes = [1, 1, 128], strides = [1, 1, 1]} : vector<4x1x128xf32> to vector<1x1x128xf32>
    %56 = vector.shape_cast %55 : vector<1x1x128xf32> to vector<1x128xf32>
    %57 = vector.shape_cast %56 : vector<1x128xf32> to vector<1x1x128xf32>
    %c0_66 = arith.constant 0 : index
    %c0_67 = arith.constant 0 : index
    %c0_68 = arith.constant 0 : index
    %c0_69 = arith.constant 0 : index
    %58 = vector.load %arg5[%c0_66, %c0_67, %c0_68, %c0_69] : memref<4x8x1x128xf32, #tpu.memory_space<vmem>>, vector<1x8x1x128xf32>
    %59 = vector.shape_cast %58 : vector<1x8x1x128xf32> to vector<8x1x128xf32>
    %60 = vector.broadcast %57 : vector<1x1x128xf32> to vector<8x1x128xf32>
    %61 = arith.mulf %60, %59 : vector<8x1x128xf32>
    %62 = vector.extract_strided_slice %54 {offsets = [1, 0, 0], sizes = [1, 1, 128], strides = [1, 1, 1]} : vector<4x1x128xf32> to vector<1x1x128xf32>
    %63 = vector.shape_cast %62 : vector<1x1x128xf32> to vector<1x128xf32>
    %64 = vector.shape_cast %63 : vector<1x128xf32> to vector<1x1x128xf32>
    %c1_70 = arith.constant 1 : index
    %c0_71 = arith.constant 0 : index
    %c0_72 = arith.constant 0 : index
    %c0_73 = arith.constant 0 : index
    %65 = vector.load %arg5[%c1_70, %c0_71, %c0_72, %c0_73] : memref<4x8x1x128xf32, #tpu.memory_space<vmem>>, vector<1x8x1x128xf32>
    %66 = vector.shape_cast %65 : vector<1x8x1x128xf32> to vector<8x1x128xf32>
    %67 = vector.broadcast %64 : vector<1x1x128xf32> to vector<8x1x128xf32>
    %68 = arith.mulf %67, %66 : vector<8x1x128xf32>
    %69 = vector.extract_strided_slice %54 {offsets = [2, 0, 0], sizes = [1, 1, 128], strides = [1, 1, 1]} : vector<4x1x128xf32> to vector<1x1x128xf32>
    %70 = vector.shape_cast %69 : vector<1x1x128xf32> to vector<1x128xf32>
    %71 = vector.shape_cast %70 : vector<1x128xf32> to vector<1x1x128xf32>
    %c2_74 = arith.constant 2 : index
    %c0_75 = arith.constant 0 : index
    %c0_76 = arith.constant 0 : index
    %c0_77 = arith.constant 0 : index
    %72 = vector.load %arg5[%c2_74, %c0_75, %c0_76, %c0_77] : memref<4x8x1x128xf32, #tpu.memory_space<vmem>>, vector<1x8x1x128xf32>
    %73 = vector.shape_cast %72 : vector<1x8x1x128xf32> to vector<8x1x128xf32>
    %74 = vector.broadcast %71 : vector<1x1x128xf32> to vector<8x1x128xf32>
    %75 = arith.mulf %74, %73 : vector<8x1x128xf32>
    %76 = arith.addf %61, %75 : vector<8x1x128xf32>
    %77 = vector.extract_strided_slice %54 {offsets = [3, 0, 0], sizes = [1, 1, 128], strides = [1, 1, 1]} : vector<4x1x128xf32> to vector<1x1x128xf32>
    %78 = vector.shape_cast %77 : vector<1x1x128xf32> to vector<1x128xf32>
    %79 = vector.shape_cast %78 : vector<1x128xf32> to vector<1x1x128xf32>
    %c3_78 = arith.constant 3 : index
    %c0_79 = arith.constant 0 : index
    %c0_80 = arith.constant 0 : index
    %c0_81 = arith.constant 0 : index
    %80 = vector.load %arg5[%c3_78, %c0_79, %c0_80, %c0_81] : memref<4x8x1x128xf32, #tpu.memory_space<vmem>>, vector<1x8x1x128xf32>
    %81 = vector.shape_cast %80 : vector<1x8x1x128xf32> to vector<8x1x128xf32>
    %82 = vector.broadcast %79 : vector<1x1x128xf32> to vector<8x1x128xf32>
    %83 = arith.mulf %82, %81 : vector<8x1x128xf32>
    %84 = arith.addf %68, %83 : vector<8x1x128xf32>
    %85 = arith.addf %76, %84 : vector<8x1x128xf32>
    %c0_82 = arith.constant 0 : index
    %c0_83 = arith.constant 0 : index
    %c0_84 = arith.constant 0 : index
    %86 = vector.load %arg6[%c0_82, %c0_83, %c0_84] : memref<8x1x128xf32, #tpu.memory_space<vmem>>, vector<8x1x128xf32>
    %87 = arith.addf %85, %86 : vector<8x1x128xf32>
    %c0_85 = arith.constant 0 : index
    %c0_86 = arith.constant 0 : index
    %c0_87 = arith.constant 0 : index
    %88 = vector.load %arg7[%c0_85, %c0_86, %c0_87] : memref<8x1x128xf32, #tpu.memory_space<vmem>>, vector<8x1x128xf32>
    tpu.vector_store %arg7[%c0_85, %c0_86, %c0_87], %87 {strides = array<i32>} : memref<8x1x128xf32, #tpu.memory_space<vmem>>, vector<8x1x128xf32>,
    %c0_i32 = arith.constant 0 : i32
    %89 = arith.cmpi eq, %arg1, %c0_i32 : i32
    %90 = arith.extui %89 : i1 to i32
    %c0_i32_88 = arith.constant 0 : i32
    %91 = arith.cmpi ne, %90, %c0_i32_88 : i32
    scf.if %91 {
      %cst_102 = arith.constant 0.000000e+00 : f32
      %107 = vector.broadcast %cst_102 : f32 to vector<2x8x128xf32>
      %c0_103 = arith.constant 0 : index
      %c0_104 = arith.constant 0 : index
      %c0_105 = arith.constant 0 : index
      %108 = vector.load %arg8[%c0_103, %c0_104, %c0_105] : memref<2x8x128xf32, #tpu.memory_space<vmem>>, vector<2x8x128xf32>
      tpu.vector_store %arg8[%c0_103, %c0_104, %c0_105], %107 {strides = array<i32>} : memref<2x8x128xf32, #tpu.memory_space<vmem>>, vector<2x8x128xf32>,
    } else {
    }
    %c0_89 = arith.constant 0 : index
    %c0_90 = arith.constant 0 : index
    %c0_91 = arith.constant 0 : index
    %92 = vector.load %arg8[%c0_89, %c0_90, %c0_91] : memref<2x8x128xf32, #tpu.memory_space<vmem>>, vector<1x8x128xf32>
    %93 = vector.shape_cast %92 : vector<1x8x128xf32> to vector<8x128xf32>
    %cst = arith.constant dense<0.000000e+00> : vector<8x128xf32>
    %94 = vector.multi_reduction <add>, %87, %cst [1] : vector<8x1x128xf32> to vector<8x128xf32>
    %95 = arith.addf %93, %94 : vector<8x128xf32>
    %c0_92 = arith.constant 0 : index
    %c0_93 = arith.constant 0 : index
    %c0_94 = arith.constant 0 : index
    %96 = vector.load %arg8[%c0_92, %c0_93, %c0_94] : memref<2x8x128xf32, #tpu.memory_space<vmem>>, vector<1x8x128xf32>
    %97 = vector.shape_cast %96 : vector<1x8x128xf32> to vector<8x128xf32>
    %98 = vector.shape_cast %95 : vector<8x128xf32> to vector<1x8x128xf32>
    tpu.vector_store %arg8[%c0_92, %c0_93, %c0_94], %98 {strides = array<i32>} : memref<2x8x128xf32, #tpu.memory_space<vmem>>, vector<1x8x128xf32>,
    %c1_95 = arith.constant 1 : index
    %c0_96 = arith.constant 0 : index
    %c0_97 = arith.constant 0 : index
    %99 = vector.load %arg8[%c1_95, %c0_96, %c0_97] : memref<2x8x128xf32, #tpu.memory_space<vmem>>, vector<1x8x128xf32>
    %100 = vector.shape_cast %99 : vector<1x8x128xf32> to vector<8x128xf32>
    %101 = arith.mulf %87, %87 : vector<8x1x128xf32>
    %cst_98 = arith.constant dense<0.000000e+00> : vector<8x128xf32>
    %102 = vector.multi_reduction <add>, %101, %cst_98 [1] : vector<8x1x128xf32> to vector<8x128xf32>
    %103 = arith.addf %100, %102 : vector<8x128xf32>
    %c1_99 = arith.constant 1 : index
    %c0_100 = arith.constant 0 : index
    %c0_101 = arith.constant 0 : index
    %104 = vector.load %arg8[%c1_99, %c0_100, %c0_101] : memref<2x8x128xf32, #tpu.memory_space<vmem>>, vector<1x8x128xf32>
    %105 = vector.shape_cast %104 : vector<1x8x128xf32> to vector<8x128xf32>
    %106 = vector.shape_cast %103 : vector<8x128xf32> to vector<1x8x128xf32>
    tpu.vector_store %arg8[%c1_99, %c0_100, %c0_101], %106 {strides = array<i32>} : memref<2x8x128xf32, #tpu.memory_space<vmem>>, vector<1x8x128xf32>,
    return
  }
  func.func @transform_0(%arg0: i32, %arg1: i32) -> (i32, i32, i32, i32) {
    %c1_i32 = arith.constant 1 : i32
    %0 = arith.muli %arg0, %c1_i32 : i32
    %1 = arith.addi %0, %arg1 : i32
    %c0_i32 = arith.constant 0 : i32
    %c0_i32_0 = arith.constant 0 : i32
    %c0_i32_1 = arith.constant 0 : i32
    %c0_i32_2 = arith.constant 0 : i32
    return %c0_i32, %c0_i32_0, %1, %c0_i32_1 : i32, i32, i32, i32
  }
  func.func @transform_1(%arg0: i32, %arg1: i32) -> (i32, i32, i32, i32) {
    %c0_i32 = arith.constant 0 : i32
    %c0_i32_0 = arith.constant 0 : i32
    %c0_i32_1 = arith.constant 0 : i32
    %c0_i32_2 = arith.constant 0 : i32
    %c0_i32_3 = arith.constant 0 : i32
    return %c0_i32, %c0_i32_0, %c0_i32_1, %c0_i32_2 : i32, i32, i32, i32
  }
  func.func @transform_2(%arg0: i32, %arg1: i32) -> (i32, i32, i32) {
    %c0_i32 = arith.constant 0 : i32
    %c0_i32_0 = arith.constant 0 : i32
    %c0_i32_1 = arith.constant 0 : i32
    %c0_i32_2 = arith.constant 0 : i32
    return %c0_i32, %c0_i32_0, %c0_i32_1 : i32, i32, i32
  }
  func.func @transform_3(%arg0: i32, %arg1: i32) -> (i32, i32, i32, i32) {
    %c0_i32 = arith.constant 0 : i32
    %c0_i32_0 = arith.constant 0 : i32
    %c0_i32_1 = arith.constant 0 : i32
    %c0_i32_2 = arith.constant 0 : i32
    %c0_i32_3 = arith.constant 0 : i32
    return %c0_i32, %c0_i32_0, %c0_i32_1, %c0_i32_2 : i32, i32, i32, i32
  }
  func.func @transform_4(%arg0: i32, %arg1: i32) -> (i32, i32, i32) {
    %c0_i32 = arith.constant 0 : i32
    %c0_i32_0 = arith.constant 0 : i32
    %c0_i32_1 = arith.constant 0 : i32
    %c0_i32_2 = arith.constant 0 : i32
    return %c0_i32, %c0_i32_0, %c0_i32_1 : i32, i32, i32
  }
  func.func @transform_5(%arg0: i32, %arg1: i32) -> (i32, i32, i32) {
    %c1_i32 = arith.constant 1 : i32
    %0 = arith.muli %arg0, %c1_i32 : i32
    %1 = arith.addi %0, %arg1 : i32
    %c0_i32 = arith.constant 0 : i32
    %c0_i32_0 = arith.constant 0 : i32
    %c0_i32_1 = arith.constant 0 : i32
    return %c0_i32, %1, %c0_i32_0 : i32, i32, i32
  }
  func.func @transform_6(%arg0: i32, %arg1: i32) -> (i32, i32, i32) {
    %c0_i32 = arith.constant 0 : i32
    %c0_i32_0 = arith.constant 0 : i32
    %c0_i32_1 = arith.constant 0 : i32
    return %arg0, %c0_i32, %c0_i32_0 : i32, i32, i32
  }
}

module attributes {stable_mosaic.version = 11 : i64} {
  func.func @_bn1_cat_conv_kernel(%arg0: i32, %arg1: i32, %arg2: memref<8x1x128xf32, #tpu.memory_space<vmem>>, %arg3: memref<8x1x128xf32, #tpu.memory_space<vmem>>, %arg4: memref<8x1x128xf32, #tpu.memory_space<vmem>>, %arg5: memref<8x1x128xf32, #tpu.memory_space<vmem>>, %arg6: memref<16x8x1x128xf32, #tpu.memory_space<vmem>>, %arg7: memref<8x1x128xf32, #tpu.memory_space<vmem>>, %arg8: memref<8x1x128xf32, #tpu.memory_space<vmem>>, %arg9: memref<2x8x128xf32, #tpu.memory_space<vmem>>) attributes {dimension_semantics = [#tpu.dimension_semantics<parallel>, #tpu.dimension_semantics<arbitrary>], iteration_bounds = array<i64: 1, 1>, scalar_prefetch = 0 : i64, scratch_operands = 0 : i64, tpu.core_type = #tpu.core_type<tc>, window_params = [{transform_indices = @transform_0, window_bounds = array<i64: 8, 1, 128>}, {transform_indices = @transform_1, window_bounds = array<i64: 8, 1, 128>}, {pipeline_mode = #tpu.pipeline_mode<synchronous>, transform_indices = @transform_2, window_bounds = array<i64: 8, 1, 128>}, {pipeline_mode = #tpu.pipeline_mode<synchronous>, transform_indices = @transform_3, window_bounds = array<i64: 8, 1, 128>}, {pipeline_mode = #tpu.pipeline_mode<synchronous>, transform_indices = @transform_4, window_bounds = array<i64: 16, 8, 1, 128>}, {pipeline_mode = #tpu.pipeline_mode<synchronous>, transform_indices = @transform_5, window_bounds = array<i64: 8, 1, 128>}, {transform_indices = @transform_6, window_bounds = array<i64: 8, 1, 128>}, {transform_indices = @transform_7, window_bounds = array<i64: 2, 8, 128>}]} {
    %c0 = arith.constant 0 : index
    %c0_0 = arith.constant 0 : index
    %c0_1 = arith.constant 0 : index
    %0 = vector.load %arg3[%c0, %c0_0, %c0_1] : memref<8x1x128xf32, #tpu.memory_space<vmem>>, vector<1x1x128xf32>
    %1 = vector.shape_cast %0 : vector<1x1x128xf32> to vector<1x128xf32>
    %2 = vector.shape_cast %1 : vector<1x128xf32> to vector<1x1x128xf32>
    %c0_2 = arith.constant 0 : index
    %c0_3 = arith.constant 0 : index
    %c0_4 = arith.constant 0 : index
    %c0_5 = arith.constant 0 : index
    %3 = vector.load %arg6[%c0_2, %c0_3, %c0_4, %c0_5] : memref<16x8x1x128xf32, #tpu.memory_space<vmem>>, vector<1x8x1x128xf32>
    %4 = vector.shape_cast %3 : vector<1x8x1x128xf32> to vector<8x1x128xf32>
    %5 = vector.broadcast %2 : vector<1x1x128xf32> to vector<8x1x128xf32>
    %6 = arith.mulf %5, %4 : vector<8x1x128xf32>
    %c1 = arith.constant 1 : index
    %c0_6 = arith.constant 0 : index
    %c0_7 = arith.constant 0 : index
    %7 = vector.load %arg3[%c1, %c0_6, %c0_7] : memref<8x1x128xf32, #tpu.memory_space<vmem>>, vector<1x1x128xf32>
    %8 = vector.shape_cast %7 : vector<1x1x128xf32> to vector<1x128xf32>
    %9 = vector.shape_cast %8 : vector<1x128xf32> to vector<1x1x128xf32>
    %c1_8 = arith.constant 1 : index
    %c0_9 = arith.constant 0 : index
    %c0_10 = arith.constant 0 : index
    %c0_11 = arith.constant 0 : index
    %10 = vector.load %arg6[%c1_8, %c0_9, %c0_10, %c0_11] : memref<16x8x1x128xf32, #tpu.memory_space<vmem>>, vector<1x8x1x128xf32>
    %11 = vector.shape_cast %10 : vector<1x8x1x128xf32> to vector<8x1x128xf32>
    %12 = vector.broadcast %9 : vector<1x1x128xf32> to vector<8x1x128xf32>
    %13 = arith.mulf %12, %11 : vector<8x1x128xf32>
    %c2 = arith.constant 2 : index
    %c0_12 = arith.constant 0 : index
    %c0_13 = arith.constant 0 : index
    %14 = vector.load %arg3[%c2, %c0_12, %c0_13] : memref<8x1x128xf32, #tpu.memory_space<vmem>>, vector<1x1x128xf32>
    %15 = vector.shape_cast %14 : vector<1x1x128xf32> to vector<1x128xf32>
    %16 = vector.shape_cast %15 : vector<1x128xf32> to vector<1x1x128xf32>
    %c2_14 = arith.constant 2 : index
    %c0_15 = arith.constant 0 : index
    %c0_16 = arith.constant 0 : index
    %c0_17 = arith.constant 0 : index
    %17 = vector.load %arg6[%c2_14, %c0_15, %c0_16, %c0_17] : memref<16x8x1x128xf32, #tpu.memory_space<vmem>>, vector<1x8x1x128xf32>
    %18 = vector.shape_cast %17 : vector<1x8x1x128xf32> to vector<8x1x128xf32>
    %19 = vector.broadcast %16 : vector<1x1x128xf32> to vector<8x1x128xf32>
    %20 = arith.mulf %19, %18 : vector<8x1x128xf32>
    %c3 = arith.constant 3 : index
    %c0_18 = arith.constant 0 : index
    %c0_19 = arith.constant 0 : index
    %21 = vector.load %arg3[%c3, %c0_18, %c0_19] : memref<8x1x128xf32, #tpu.memory_space<vmem>>, vector<1x1x128xf32>
    %22 = vector.shape_cast %21 : vector<1x1x128xf32> to vector<1x128xf32>
    %23 = vector.shape_cast %22 : vector<1x128xf32> to vector<1x1x128xf32>
    %c3_20 = arith.constant 3 : index
    %c0_21 = arith.constant 0 : index
    %c0_22 = arith.constant 0 : index
    %c0_23 = arith.constant 0 : index
    %24 = vector.load %arg6[%c3_20, %c0_21, %c0_22, %c0_23] : memref<16x8x1x128xf32, #tpu.memory_space<vmem>>, vector<1x8x1x128xf32>
    %25 = vector.shape_cast %24 : vector<1x8x1x128xf32> to vector<8x1x128xf32>
    %26 = vector.broadcast %23 : vector<1x1x128xf32> to vector<8x1x128xf32>
    %27 = arith.mulf %26, %25 : vector<8x1x128xf32>
    %c4 = arith.constant 4 : index
    %c0_24 = arith.constant 0 : index
    %c0_25 = arith.constant 0 : index
    %28 = vector.load %arg3[%c4, %c0_24, %c0_25] : memref<8x1x128xf32, #tpu.memory_space<vmem>>, vector<1x1x128xf32>
    %29 = vector.shape_cast %28 : vector<1x1x128xf32> to vector<1x128xf32>
    %30 = vector.shape_cast %29 : vector<1x128xf32> to vector<1x1x128xf32>
    %c4_26 = arith.constant 4 : index
    %c0_27 = arith.constant 0 : index
    %c0_28 = arith.constant 0 : index
    %c0_29 = arith.constant 0 : index
    %31 = vector.load %arg6[%c4_26, %c0_27, %c0_28, %c0_29] : memref<16x8x1x128xf32, #tpu.memory_space<vmem>>, vector<1x8x1x128xf32>
    %32 = vector.shape_cast %31 : vector<1x8x1x128xf32> to vector<8x1x128xf32>
    %33 = vector.broadcast %30 : vector<1x1x128xf32> to vector<8x1x128xf32>
    %34 = arith.mulf %33, %32 : vector<8x1x128xf32>
    %35 = arith.addf %6, %34 : vector<8x1x128xf32>
    %c5 = arith.constant 5 : index
    %c0_30 = arith.constant 0 : index
    %c0_31 = arith.constant 0 : index
    %36 = vector.load %arg3[%c5, %c0_30, %c0_31] : memref<8x1x128xf32, #tpu.memory_space<vmem>>, vector<1x1x128xf32>
    %37 = vector.shape_cast %36 : vector<1x1x128xf32> to vector<1x128xf32>
    %38 = vector.shape_cast %37 : vector<1x128xf32> to vector<1x1x128xf32>
    %c5_32 = arith.constant 5 : index
    %c0_33 = arith.constant 0 : index
    %c0_34 = arith.constant 0 : index
    %c0_35 = arith.constant 0 : index
    %39 = vector.load %arg6[%c5_32, %c0_33, %c0_34, %c0_35] : memref<16x8x1x128xf32, #tpu.memory_space<vmem>>, vector<1x8x1x128xf32>
    %40 = vector.shape_cast %39 : vector<1x8x1x128xf32> to vector<8x1x128xf32>
    %41 = vector.broadcast %38 : vector<1x1x128xf32> to vector<8x1x128xf32>
    %42 = arith.mulf %41, %40 : vector<8x1x128xf32>
    %43 = arith.addf %13, %42 : vector<8x1x128xf32>
    %c6 = arith.constant 6 : index
    %c0_36 = arith.constant 0 : index
    %c0_37 = arith.constant 0 : index
    %44 = vector.load %arg3[%c6, %c0_36, %c0_37] : memref<8x1x128xf32, #tpu.memory_space<vmem>>, vector<1x1x128xf32>
    %45 = vector.shape_cast %44 : vector<1x1x128xf32> to vector<1x128xf32>
    %46 = vector.shape_cast %45 : vector<1x128xf32> to vector<1x1x128xf32>
    %c6_38 = arith.constant 6 : index
    %c0_39 = arith.constant 0 : index
    %c0_40 = arith.constant 0 : index
    %c0_41 = arith.constant 0 : index
    %47 = vector.load %arg6[%c6_38, %c0_39, %c0_40, %c0_41] : memref<16x8x1x128xf32, #tpu.memory_space<vmem>>, vector<1x8x1x128xf32>
    %48 = vector.shape_cast %47 : vector<1x8x1x128xf32> to vector<8x1x128xf32>
    %49 = vector.broadcast %46 : vector<1x1x128xf32> to vector<8x1x128xf32>
    %50 = arith.mulf %49, %48 : vector<8x1x128xf32>
    %51 = arith.addf %20, %50 : vector<8x1x128xf32>
    %c7 = arith.constant 7 : index
    %c0_42 = arith.constant 0 : index
    %c0_43 = arith.constant 0 : index
    %52 = vector.load %arg3[%c7, %c0_42, %c0_43] : memref<8x1x128xf32, #tpu.memory_space<vmem>>, vector<1x1x128xf32>
    %53 = vector.shape_cast %52 : vector<1x1x128xf32> to vector<1x128xf32>
    %54 = vector.shape_cast %53 : vector<1x128xf32> to vector<1x1x128xf32>
    %c7_44 = arith.constant 7 : index
    %c0_45 = arith.constant 0 : index
    %c0_46 = arith.constant 0 : index
    %c0_47 = arith.constant 0 : index
    %55 = vector.load %arg6[%c7_44, %c0_45, %c0_46, %c0_47] : memref<16x8x1x128xf32, #tpu.memory_space<vmem>>, vector<1x8x1x128xf32>
    %56 = vector.shape_cast %55 : vector<1x8x1x128xf32> to vector<8x1x128xf32>
    %57 = vector.broadcast %54 : vector<1x1x128xf32> to vector<8x1x128xf32>
    %58 = arith.mulf %57, %56 : vector<8x1x128xf32>
    %59 = arith.addf %27, %58 : vector<8x1x128xf32>
    %c0_48 = arith.constant 0 : index
    %c0_49 = arith.constant 0 : index
    %c0_50 = arith.constant 0 : index
    %60 = vector.load %arg2[%c0_48, %c0_49, %c0_50] : memref<8x1x128xf32, #tpu.memory_space<vmem>>, vector<1x1x128xf32>
    %61 = vector.shape_cast %60 : vector<1x1x128xf32> to vector<1x128xf32>
    %c0_51 = arith.constant 0 : index
    %c0_52 = arith.constant 0 : index
    %c0_53 = arith.constant 0 : index
    %62 = vector.load %arg4[%c0_51, %c0_52, %c0_53] : memref<8x1x128xf32, #tpu.memory_space<vmem>>, vector<1x1x128xf32>
    %63 = vector.shape_cast %62 : vector<1x1x128xf32> to vector<1x128xf32>
    %64 = arith.mulf %61, %63 : vector<1x128xf32>
    %c0_54 = arith.constant 0 : index
    %c0_55 = arith.constant 0 : index
    %c0_56 = arith.constant 0 : index
    %65 = vector.load %arg5[%c0_54, %c0_55, %c0_56] : memref<8x1x128xf32, #tpu.memory_space<vmem>>, vector<1x1x128xf32>
    %66 = vector.shape_cast %65 : vector<1x1x128xf32> to vector<1x128xf32>
    %67 = arith.addf %64, %66 : vector<1x128xf32>
    %cst = arith.constant 0.000000e+00 : f32
    %68 = vector.broadcast %cst : f32 to vector<1x128xf32>
    %69 = arith.maximumf %67, %68 : vector<1x128xf32>
    %70 = vector.shape_cast %69 : vector<1x128xf32> to vector<1x1x128xf32>
    %c8 = arith.constant 8 : index
    %c0_57 = arith.constant 0 : index
    %c0_58 = arith.constant 0 : index
    %c0_59 = arith.constant 0 : index
    %71 = vector.load %arg6[%c8, %c0_57, %c0_58, %c0_59] : memref<16x8x1x128xf32, #tpu.memory_space<vmem>>, vector<1x8x1x128xf32>
    %72 = vector.shape_cast %71 : vector<1x8x1x128xf32> to vector<8x1x128xf32>
    %73 = vector.broadcast %70 : vector<1x1x128xf32> to vector<8x1x128xf32>
    %74 = arith.mulf %73, %72 : vector<8x1x128xf32>
    %75 = arith.addf %35, %74 : vector<8x1x128xf32>
    %c1_60 = arith.constant 1 : index
    %c0_61 = arith.constant 0 : index
    %c0_62 = arith.constant 0 : index
    %76 = vector.load %arg2[%c1_60, %c0_61, %c0_62] : memref<8x1x128xf32, #tpu.memory_space<vmem>>, vector<1x1x128xf32>
    %77 = vector.shape_cast %76 : vector<1x1x128xf32> to vector<1x128xf32>
    %c1_63 = arith.constant 1 : index
    %c0_64 = arith.constant 0 : index
    %c0_65 = arith.constant 0 : index
    %78 = vector.load %arg4[%c1_63, %c0_64, %c0_65] : memref<8x1x128xf32, #tpu.memory_space<vmem>>, vector<1x1x128xf32>
    %79 = vector.shape_cast %78 : vector<1x1x128xf32> to vector<1x128xf32>
    %80 = arith.mulf %77, %79 : vector<1x128xf32>
    %c1_66 = arith.constant 1 : index
    %c0_67 = arith.constant 0 : index
    %c0_68 = arith.constant 0 : index
    %81 = vector.load %arg5[%c1_66, %c0_67, %c0_68] : memref<8x1x128xf32, #tpu.memory_space<vmem>>, vector<1x1x128xf32>
    %82 = vector.shape_cast %81 : vector<1x1x128xf32> to vector<1x128xf32>
    %83 = arith.addf %80, %82 : vector<1x128xf32>
    %cst_69 = arith.constant 0.000000e+00 : f32
    %84 = vector.broadcast %cst_69 : f32 to vector<1x128xf32>
    %85 = arith.maximumf %83, %84 : vector<1x128xf32>
    %86 = vector.shape_cast %85 : vector<1x128xf32> to vector<1x1x128xf32>
    %c9 = arith.constant 9 : index
    %c0_70 = arith.constant 0 : index
    %c0_71 = arith.constant 0 : index
    %c0_72 = arith.constant 0 : index
    %87 = vector.load %arg6[%c9, %c0_70, %c0_71, %c0_72] : memref<16x8x1x128xf32, #tpu.memory_space<vmem>>, vector<1x8x1x128xf32>
    %88 = vector.shape_cast %87 : vector<1x8x1x128xf32> to vector<8x1x128xf32>
    %89 = vector.broadcast %86 : vector<1x1x128xf32> to vector<8x1x128xf32>
    %90 = arith.mulf %89, %88 : vector<8x1x128xf32>
    %91 = arith.addf %43, %90 : vector<8x1x128xf32>
    %c2_73 = arith.constant 2 : index
    %c0_74 = arith.constant 0 : index
    %c0_75 = arith.constant 0 : index
    %92 = vector.load %arg2[%c2_73, %c0_74, %c0_75] : memref<8x1x128xf32, #tpu.memory_space<vmem>>, vector<1x1x128xf32>
    %93 = vector.shape_cast %92 : vector<1x1x128xf32> to vector<1x128xf32>
    %c2_76 = arith.constant 2 : index
    %c0_77 = arith.constant 0 : index
    %c0_78 = arith.constant 0 : index
    %94 = vector.load %arg4[%c2_76, %c0_77, %c0_78] : memref<8x1x128xf32, #tpu.memory_space<vmem>>, vector<1x1x128xf32>
    %95 = vector.shape_cast %94 : vector<1x1x128xf32> to vector<1x128xf32>
    %96 = arith.mulf %93, %95 : vector<1x128xf32>
    %c2_79 = arith.constant 2 : index
    %c0_80 = arith.constant 0 : index
    %c0_81 = arith.constant 0 : index
    %97 = vector.load %arg5[%c2_79, %c0_80, %c0_81] : memref<8x1x128xf32, #tpu.memory_space<vmem>>, vector<1x1x128xf32>
    %98 = vector.shape_cast %97 : vector<1x1x128xf32> to vector<1x128xf32>
    %99 = arith.addf %96, %98 : vector<1x128xf32>
    %cst_82 = arith.constant 0.000000e+00 : f32
    %100 = vector.broadcast %cst_82 : f32 to vector<1x128xf32>
    %101 = arith.maximumf %99, %100 : vector<1x128xf32>
    %102 = vector.shape_cast %101 : vector<1x128xf32> to vector<1x1x128xf32>
    %c10 = arith.constant 10 : index
    %c0_83 = arith.constant 0 : index
    %c0_84 = arith.constant 0 : index
    %c0_85 = arith.constant 0 : index
    %103 = vector.load %arg6[%c10, %c0_83, %c0_84, %c0_85] : memref<16x8x1x128xf32, #tpu.memory_space<vmem>>, vector<1x8x1x128xf32>
    %104 = vector.shape_cast %103 : vector<1x8x1x128xf32> to vector<8x1x128xf32>
    %105 = vector.broadcast %102 : vector<1x1x128xf32> to vector<8x1x128xf32>
    %106 = arith.mulf %105, %104 : vector<8x1x128xf32>
    %107 = arith.addf %51, %106 : vector<8x1x128xf32>
    %c3_86 = arith.constant 3 : index
    %c0_87 = arith.constant 0 : index
    %c0_88 = arith.constant 0 : index
    %108 = vector.load %arg2[%c3_86, %c0_87, %c0_88] : memref<8x1x128xf32, #tpu.memory_space<vmem>>, vector<1x1x128xf32>
    %109 = vector.shape_cast %108 : vector<1x1x128xf32> to vector<1x128xf32>
    %c3_89 = arith.constant 3 : index
    %c0_90 = arith.constant 0 : index
    %c0_91 = arith.constant 0 : index
    %110 = vector.load %arg4[%c3_89, %c0_90, %c0_91] : memref<8x1x128xf32, #tpu.memory_space<vmem>>, vector<1x1x128xf32>
    %111 = vector.shape_cast %110 : vector<1x1x128xf32> to vector<1x128xf32>
    %112 = arith.mulf %109, %111 : vector<1x128xf32>
    %c3_92 = arith.constant 3 : index
    %c0_93 = arith.constant 0 : index
    %c0_94 = arith.constant 0 : index
    %113 = vector.load %arg5[%c3_92, %c0_93, %c0_94] : memref<8x1x128xf32, #tpu.memory_space<vmem>>, vector<1x1x128xf32>
    %114 = vector.shape_cast %113 : vector<1x1x128xf32> to vector<1x128xf32>
    %115 = arith.addf %112, %114 : vector<1x128xf32>
    %cst_95 = arith.constant 0.000000e+00 : f32
    %116 = vector.broadcast %cst_95 : f32 to vector<1x128xf32>
    %117 = arith.maximumf %115, %116 : vector<1x128xf32>
    %118 = vector.shape_cast %117 : vector<1x128xf32> to vector<1x1x128xf32>
    %c11 = arith.constant 11 : index
    %c0_96 = arith.constant 0 : index
    %c0_97 = arith.constant 0 : index
    %c0_98 = arith.constant 0 : index
    %119 = vector.load %arg6[%c11, %c0_96, %c0_97, %c0_98] : memref<16x8x1x128xf32, #tpu.memory_space<vmem>>, vector<1x8x1x128xf32>
    %120 = vector.shape_cast %119 : vector<1x8x1x128xf32> to vector<8x1x128xf32>
    %121 = vector.broadcast %118 : vector<1x1x128xf32> to vector<8x1x128xf32>
    %122 = arith.mulf %121, %120 : vector<8x1x128xf32>
    %123 = arith.addf %59, %122 : vector<8x1x128xf32>
    %c4_99 = arith.constant 4 : index
    %c0_100 = arith.constant 0 : index
    %c0_101 = arith.constant 0 : index
    %124 = vector.load %arg2[%c4_99, %c0_100, %c0_101] : memref<8x1x128xf32, #tpu.memory_space<vmem>>, vector<1x1x128xf32>
    %125 = vector.shape_cast %124 : vector<1x1x128xf32> to vector<1x128xf32>
    %c4_102 = arith.constant 4 : index
    %c0_103 = arith.constant 0 : index
    %c0_104 = arith.constant 0 : index
    %126 = vector.load %arg4[%c4_102, %c0_103, %c0_104] : memref<8x1x128xf32, #tpu.memory_space<vmem>>, vector<1x1x128xf32>
    %127 = vector.shape_cast %126 : vector<1x1x128xf32> to vector<1x128xf32>
    %128 = arith.mulf %125, %127 : vector<1x128xf32>
    %c4_105 = arith.constant 4 : index
    %c0_106 = arith.constant 0 : index
    %c0_107 = arith.constant 0 : index
    %129 = vector.load %arg5[%c4_105, %c0_106, %c0_107] : memref<8x1x128xf32, #tpu.memory_space<vmem>>, vector<1x1x128xf32>
    %130 = vector.shape_cast %129 : vector<1x1x128xf32> to vector<1x128xf32>
    %131 = arith.addf %128, %130 : vector<1x128xf32>
    %cst_108 = arith.constant 0.000000e+00 : f32
    %132 = vector.broadcast %cst_108 : f32 to vector<1x128xf32>
    %133 = arith.maximumf %131, %132 : vector<1x128xf32>
    %134 = vector.shape_cast %133 : vector<1x128xf32> to vector<1x1x128xf32>
    %c12 = arith.constant 12 : index
    %c0_109 = arith.constant 0 : index
    %c0_110 = arith.constant 0 : index
    %c0_111 = arith.constant 0 : index
    %135 = vector.load %arg6[%c12, %c0_109, %c0_110, %c0_111] : memref<16x8x1x128xf32, #tpu.memory_space<vmem>>, vector<1x8x1x128xf32>
    %136 = vector.shape_cast %135 : vector<1x8x1x128xf32> to vector<8x1x128xf32>
    %137 = vector.broadcast %134 : vector<1x1x128xf32> to vector<8x1x128xf32>
    %138 = arith.mulf %137, %136 : vector<8x1x128xf32>
    %139 = arith.addf %75, %138 : vector<8x1x128xf32>
    %c5_112 = arith.constant 5 : index
    %c0_113 = arith.constant 0 : index
    %c0_114 = arith.constant 0 : index
    %140 = vector.load %arg2[%c5_112, %c0_113, %c0_114] : memref<8x1x128xf32, #tpu.memory_space<vmem>>, vector<1x1x128xf32>
    %141 = vector.shape_cast %140 : vector<1x1x128xf32> to vector<1x128xf32>
    %c5_115 = arith.constant 5 : index
    %c0_116 = arith.constant 0 : index
    %c0_117 = arith.constant 0 : index
    %142 = vector.load %arg4[%c5_115, %c0_116, %c0_117] : memref<8x1x128xf32, #tpu.memory_space<vmem>>, vector<1x1x128xf32>
    %143 = vector.shape_cast %142 : vector<1x1x128xf32> to vector<1x128xf32>
    %144 = arith.mulf %141, %143 : vector<1x128xf32>
    %c5_118 = arith.constant 5 : index
    %c0_119 = arith.constant 0 : index
    %c0_120 = arith.constant 0 : index
    %145 = vector.load %arg5[%c5_118, %c0_119, %c0_120] : memref<8x1x128xf32, #tpu.memory_space<vmem>>, vector<1x1x128xf32>
    %146 = vector.shape_cast %145 : vector<1x1x128xf32> to vector<1x128xf32>
    %147 = arith.addf %144, %146 : vector<1x128xf32>
    %cst_121 = arith.constant 0.000000e+00 : f32
    %148 = vector.broadcast %cst_121 : f32 to vector<1x128xf32>
    %149 = arith.maximumf %147, %148 : vector<1x128xf32>
    %150 = vector.shape_cast %149 : vector<1x128xf32> to vector<1x1x128xf32>
    %c13 = arith.constant 13 : index
    %c0_122 = arith.constant 0 : index
    %c0_123 = arith.constant 0 : index
    %c0_124 = arith.constant 0 : index
    %151 = vector.load %arg6[%c13, %c0_122, %c0_123, %c0_124] : memref<16x8x1x128xf32, #tpu.memory_space<vmem>>, vector<1x8x1x128xf32>
    %152 = vector.shape_cast %151 : vector<1x8x1x128xf32> to vector<8x1x128xf32>
    %153 = vector.broadcast %150 : vector<1x1x128xf32> to vector<8x1x128xf32>
    %154 = arith.mulf %153, %152 : vector<8x1x128xf32>
    %155 = arith.addf %91, %154 : vector<8x1x128xf32>
    %c6_125 = arith.constant 6 : index
    %c0_126 = arith.constant 0 : index
    %c0_127 = arith.constant 0 : index
    %156 = vector.load %arg2[%c6_125, %c0_126, %c0_127] : memref<8x1x128xf32, #tpu.memory_space<vmem>>, vector<1x1x128xf32>
    %157 = vector.shape_cast %156 : vector<1x1x128xf32> to vector<1x128xf32>
    %c6_128 = arith.constant 6 : index
    %c0_129 = arith.constant 0 : index
    %c0_130 = arith.constant 0 : index
    %158 = vector.load %arg4[%c6_128, %c0_129, %c0_130] : memref<8x1x128xf32, #tpu.memory_space<vmem>>, vector<1x1x128xf32>
    %159 = vector.shape_cast %158 : vector<1x1x128xf32> to vector<1x128xf32>
    %160 = arith.mulf %157, %159 : vector<1x128xf32>
    %c6_131 = arith.constant 6 : index
    %c0_132 = arith.constant 0 : index
    %c0_133 = arith.constant 0 : index
    %161 = vector.load %arg5[%c6_131, %c0_132, %c0_133] : memref<8x1x128xf32, #tpu.memory_space<vmem>>, vector<1x1x128xf32>
    %162 = vector.shape_cast %161 : vector<1x1x128xf32> to vector<1x128xf32>
    %163 = arith.addf %160, %162 : vector<1x128xf32>
    %cst_134 = arith.constant 0.000000e+00 : f32
    %164 = vector.broadcast %cst_134 : f32 to vector<1x128xf32>
    %165 = arith.maximumf %163, %164 : vector<1x128xf32>
    %166 = vector.shape_cast %165 : vector<1x128xf32> to vector<1x1x128xf32>
    %c14 = arith.constant 14 : index
    %c0_135 = arith.constant 0 : index
    %c0_136 = arith.constant 0 : index
    %c0_137 = arith.constant 0 : index
    %167 = vector.load %arg6[%c14, %c0_135, %c0_136, %c0_137] : memref<16x8x1x128xf32, #tpu.memory_space<vmem>>, vector<1x8x1x128xf32>
    %168 = vector.shape_cast %167 : vector<1x8x1x128xf32> to vector<8x1x128xf32>
    %169 = vector.broadcast %166 : vector<1x1x128xf32> to vector<8x1x128xf32>
    %170 = arith.mulf %169, %168 : vector<8x1x128xf32>
    %171 = arith.addf %107, %170 : vector<8x1x128xf32>
    %c7_138 = arith.constant 7 : index
    %c0_139 = arith.constant 0 : index
    %c0_140 = arith.constant 0 : index
    %172 = vector.load %arg2[%c7_138, %c0_139, %c0_140] : memref<8x1x128xf32, #tpu.memory_space<vmem>>, vector<1x1x128xf32>
    %173 = vector.shape_cast %172 : vector<1x1x128xf32> to vector<1x128xf32>
    %c7_141 = arith.constant 7 : index
    %c0_142 = arith.constant 0 : index
    %c0_143 = arith.constant 0 : index
    %174 = vector.load %arg4[%c7_141, %c0_142, %c0_143] : memref<8x1x128xf32, #tpu.memory_space<vmem>>, vector<1x1x128xf32>
    %175 = vector.shape_cast %174 : vector<1x1x128xf32> to vector<1x128xf32>
    %176 = arith.mulf %173, %175 : vector<1x128xf32>
    %c7_144 = arith.constant 7 : index
    %c0_145 = arith.constant 0 : index
    %c0_146 = arith.constant 0 : index
    %177 = vector.load %arg5[%c7_144, %c0_145, %c0_146] : memref<8x1x128xf32, #tpu.memory_space<vmem>>, vector<1x1x128xf32>
    %178 = vector.shape_cast %177 : vector<1x1x128xf32> to vector<1x128xf32>
    %179 = arith.addf %176, %178 : vector<1x128xf32>
    %cst_147 = arith.constant 0.000000e+00 : f32
    %180 = vector.broadcast %cst_147 : f32 to vector<1x128xf32>
    %181 = arith.maximumf %179, %180 : vector<1x128xf32>
    %182 = vector.shape_cast %181 : vector<1x128xf32> to vector<1x1x128xf32>
    %c15 = arith.constant 15 : index
    %c0_148 = arith.constant 0 : index
    %c0_149 = arith.constant 0 : index
    %c0_150 = arith.constant 0 : index
    %183 = vector.load %arg6[%c15, %c0_148, %c0_149, %c0_150] : memref<16x8x1x128xf32, #tpu.memory_space<vmem>>, vector<1x8x1x128xf32>
    %184 = vector.shape_cast %183 : vector<1x8x1x128xf32> to vector<8x1x128xf32>
    %185 = vector.broadcast %182 : vector<1x1x128xf32> to vector<8x1x128xf32>
    %186 = arith.mulf %185, %184 : vector<8x1x128xf32>
    %187 = arith.addf %123, %186 : vector<8x1x128xf32>
    %188 = arith.addf %139, %155 : vector<8x1x128xf32>
    %189 = arith.addf %188, %171 : vector<8x1x128xf32>
    %190 = arith.addf %189, %187 : vector<8x1x128xf32>
    %c0_151 = arith.constant 0 : index
    %c0_152 = arith.constant 0 : index
    %c0_153 = arith.constant 0 : index
    %191 = vector.load %arg7[%c0_151, %c0_152, %c0_153] : memref<8x1x128xf32, #tpu.memory_space<vmem>>, vector<8x1x128xf32>
    %192 = arith.addf %190, %191 : vector<8x1x128xf32>
    %c0_154 = arith.constant 0 : index
    %c0_155 = arith.constant 0 : index
    %c0_156 = arith.constant 0 : index
    %193 = vector.load %arg8[%c0_154, %c0_155, %c0_156] : memref<8x1x128xf32, #tpu.memory_space<vmem>>, vector<8x1x128xf32>
    tpu.vector_store %arg8[%c0_154, %c0_155, %c0_156], %192 {strides = array<i32>} : memref<8x1x128xf32, #tpu.memory_space<vmem>>, vector<8x1x128xf32>,
    %c0_i32 = arith.constant 0 : i32
    %194 = arith.cmpi eq, %arg1, %c0_i32 : i32
    %195 = arith.extui %194 : i1 to i32
    %c0_i32_157 = arith.constant 0 : i32
    %196 = arith.cmpi ne, %195, %c0_i32_157 : i32
    scf.if %196 {
      %cst_172 = arith.constant 0.000000e+00 : f32
      %212 = vector.broadcast %cst_172 : f32 to vector<2x8x128xf32>
      %c0_173 = arith.constant 0 : index
      %c0_174 = arith.constant 0 : index
      %c0_175 = arith.constant 0 : index
      %213 = vector.load %arg9[%c0_173, %c0_174, %c0_175] : memref<2x8x128xf32, #tpu.memory_space<vmem>>, vector<2x8x128xf32>
      tpu.vector_store %arg9[%c0_173, %c0_174, %c0_175], %212 {strides = array<i32>} : memref<2x8x128xf32, #tpu.memory_space<vmem>>, vector<2x8x128xf32>,
    } else {
    }
    %c0_158 = arith.constant 0 : index
    %c0_159 = arith.constant 0 : index
    %c0_160 = arith.constant 0 : index
    %197 = vector.load %arg9[%c0_158, %c0_159, %c0_160] : memref<2x8x128xf32, #tpu.memory_space<vmem>>, vector<1x8x128xf32>
    %198 = vector.shape_cast %197 : vector<1x8x128xf32> to vector<8x128xf32>
    %cst_161 = arith.constant dense<0.000000e+00> : vector<8x128xf32>
    %199 = vector.multi_reduction <add>, %192, %cst_161 [1] : vector<8x1x128xf32> to vector<8x128xf32>
    %200 = arith.addf %198, %199 : vector<8x128xf32>
    %c0_162 = arith.constant 0 : index
    %c0_163 = arith.constant 0 : index
    %c0_164 = arith.constant 0 : index
    %201 = vector.load %arg9[%c0_162, %c0_163, %c0_164] : memref<2x8x128xf32, #tpu.memory_space<vmem>>, vector<1x8x128xf32>
    %202 = vector.shape_cast %201 : vector<1x8x128xf32> to vector<8x128xf32>
    %203 = vector.shape_cast %200 : vector<8x128xf32> to vector<1x8x128xf32>
    tpu.vector_store %arg9[%c0_162, %c0_163, %c0_164], %203 {strides = array<i32>} : memref<2x8x128xf32, #tpu.memory_space<vmem>>, vector<1x8x128xf32>,
    %c1_165 = arith.constant 1 : index
    %c0_166 = arith.constant 0 : index
    %c0_167 = arith.constant 0 : index
    %204 = vector.load %arg9[%c1_165, %c0_166, %c0_167] : memref<2x8x128xf32, #tpu.memory_space<vmem>>, vector<1x8x128xf32>
    %205 = vector.shape_cast %204 : vector<1x8x128xf32> to vector<8x128xf32>
    %206 = arith.mulf %192, %192 : vector<8x1x128xf32>
    %cst_168 = arith.constant dense<0.000000e+00> : vector<8x128xf32>
    %207 = vector.multi_reduction <add>, %206, %cst_168 [1] : vector<8x1x128xf32> to vector<8x128xf32>
    %208 = arith.addf %205, %207 : vector<8x128xf32>
    %c1_169 = arith.constant 1 : index
    %c0_170 = arith.constant 0 : index
    %c0_171 = arith.constant 0 : index
    %209 = vector.load %arg9[%c1_169, %c0_170, %c0_171] : memref<2x8x128xf32, #tpu.memory_space<vmem>>, vector<1x8x128xf32>
    %210 = vector.shape_cast %209 : vector<1x8x128xf32> to vector<8x128xf32>
    %211 = vector.shape_cast %208 : vector<8x128xf32> to vector<1x8x128xf32>
    tpu.vector_store %arg9[%c1_169, %c0_170, %c0_171], %211 {strides = array<i32>} : memref<2x8x128xf32, #tpu.memory_space<vmem>>, vector<1x8x128xf32>,
    return
  }
  func.func @transform_0(%arg0: i32, %arg1: i32) -> (i32, i32, i32) {
    %c1_i32 = arith.constant 1 : i32
    %0 = arith.muli %arg0, %c1_i32 : i32
    %1 = arith.addi %0, %arg1 : i32
    %c0_i32 = arith.constant 0 : i32
    %c0_i32_0 = arith.constant 0 : i32
    %c0_i32_1 = arith.constant 0 : i32
    return %c0_i32, %1, %c0_i32_0 : i32, i32, i32
  }
  func.func @transform_1(%arg0: i32, %arg1: i32) -> (i32, i32, i32) {
    %c1_i32 = arith.constant 1 : i32
    %0 = arith.muli %arg0, %c1_i32 : i32
    %1 = arith.addi %0, %arg1 : i32
    %c0_i32 = arith.constant 0 : i32
    %c0_i32_0 = arith.constant 0 : i32
    %c0_i32_1 = arith.constant 0 : i32
    return %c0_i32, %1, %c0_i32_0 : i32, i32, i32
  }
  func.func @transform_2(%arg0: i32, %arg1: i32) -> (i32, i32, i32) {
    %c0_i32 = arith.constant 0 : i32
    %c0_i32_0 = arith.constant 0 : i32
    %c0_i32_1 = arith.constant 0 : i32
    %c0_i32_2 = arith.constant 0 : i32
    return %c0_i32, %c0_i32_0, %c0_i32_1 : i32, i32, i32
  }
  func.func @transform_3(%arg0: i32, %arg1: i32) -> (i32, i32, i32) {
    %c0_i32 = arith.constant 0 : i32
    %c0_i32_0 = arith.constant 0 : i32
    %c0_i32_1 = arith.constant 0 : i32
    %c0_i32_2 = arith.constant 0 : i32
    return %c0_i32, %c0_i32_0, %c0_i32_1 : i32, i32, i32
  }
  func.func @transform_4(%arg0: i32, %arg1: i32) -> (i32, i32, i32, i32) {
    %c0_i32 = arith.constant 0 : i32
    %c0_i32_0 = arith.constant 0 : i32
    %c0_i32_1 = arith.constant 0 : i32
    %c0_i32_2 = arith.constant 0 : i32
    %c0_i32_3 = arith.constant 0 : i32
    return %c0_i32, %c0_i32_0, %c0_i32_1, %c0_i32_2 : i32, i32, i32, i32
  }
  func.func @transform_5(%arg0: i32, %arg1: i32) -> (i32, i32, i32) {
    %c0_i32 = arith.constant 0 : i32
    %c0_i32_0 = arith.constant 0 : i32
    %c0_i32_1 = arith.constant 0 : i32
    %c0_i32_2 = arith.constant 0 : i32
    return %c0_i32, %c0_i32_0, %c0_i32_1 : i32, i32, i32
  }
  func.func @transform_6(%arg0: i32, %arg1: i32) -> (i32, i32, i32) {
    %c1_i32 = arith.constant 1 : i32
    %0 = arith.muli %arg0, %c1_i32 : i32
    %1 = arith.addi %0, %arg1 : i32
    %c0_i32 = arith.constant 0 : i32
    %c0_i32_0 = arith.constant 0 : i32
    %c0_i32_1 = arith.constant 0 : i32
    return %c0_i32, %1, %c0_i32_0 : i32, i32, i32
  }
  func.func @transform_7(%arg0: i32, %arg1: i32) -> (i32, i32, i32) {
    %c0_i32 = arith.constant 0 : i32
    %c0_i32_0 = arith.constant 0 : i32
    %c0_i32_1 = arith.constant 0 : i32
    return %arg0, %c0_i32, %c0_i32_0 : i32, i32, i32
  }
}

module attributes {stable_mosaic.version = 11 : i64} {
  func.func @_bn2_relu_kernel(%arg0: i32, %arg1: memref<8x1x128xf32, #tpu.memory_space<vmem>>, %arg2: memref<8x1x128xf32, #tpu.memory_space<vmem>>, %arg3: memref<8x1x128xf32, #tpu.memory_space<vmem>>, %arg4: memref<8x1x128xf32, #tpu.memory_space<vmem>>) attributes {dimension_semantics = [#tpu.dimension_semantics<parallel>], iteration_bounds = array<i64: 1>, scalar_prefetch = 0 : i64, scratch_operands = 0 : i64, tpu.core_type = #tpu.core_type<tc>, window_params = [{transform_indices = @transform_0, window_bounds = array<i64: 8, 1, 128>}, {pipeline_mode = #tpu.pipeline_mode<synchronous>, transform_indices = @transform_1, window_bounds = array<i64: 8, 1, 128>}, {pipeline_mode = #tpu.pipeline_mode<synchronous>, transform_indices = @transform_2, window_bounds = array<i64: 8, 1, 128>}, {transform_indices = @transform_3, window_bounds = array<i64: 8, 1, 128>}]} {
    %c0 = arith.constant 0 : index
    %c0_0 = arith.constant 0 : index
    %c0_1 = arith.constant 0 : index
    %0 = vector.load %arg1[%c0, %c0_0, %c0_1] : memref<8x1x128xf32, #tpu.memory_space<vmem>>, vector<8x1x128xf32>
    %c0_2 = arith.constant 0 : index
    %c0_3 = arith.constant 0 : index
    %c0_4 = arith.constant 0 : index
    %1 = vector.load %arg2[%c0_2, %c0_3, %c0_4] : memref<8x1x128xf32, #tpu.memory_space<vmem>>, vector<8x1x128xf32>
    %2 = arith.mulf %0, %1 : vector<8x1x128xf32>
    %c0_5 = arith.constant 0 : index
    %c0_6 = arith.constant 0 : index
    %c0_7 = arith.constant 0 : index
    %3 = vector.load %arg3[%c0_5, %c0_6, %c0_7] : memref<8x1x128xf32, #tpu.memory_space<vmem>>, vector<8x1x128xf32>
    %4 = arith.addf %2, %3 : vector<8x1x128xf32>
    %cst = arith.constant 0.000000e+00 : f32
    %5 = vector.broadcast %cst : f32 to vector<8x1x128xf32>
    %6 = arith.maximumf %4, %5 : vector<8x1x128xf32>
    %c0_8 = arith.constant 0 : index
    %c0_9 = arith.constant 0 : index
    %c0_10 = arith.constant 0 : index
    %7 = vector.load %arg4[%c0_8, %c0_9, %c0_10] : memref<8x1x128xf32, #tpu.memory_space<vmem>>, vector<8x1x128xf32>
    tpu.vector_store %arg4[%c0_8, %c0_9, %c0_10], %6 {strides = array<i32>} : memref<8x1x128xf32, #tpu.memory_space<vmem>>, vector<8x1x128xf32>,
    return
  }
  func.func @transform_0(%arg0: i32) -> (i32, i32, i32) {
    %c0_i32 = arith.constant 0 : i32
    %c0_i32_0 = arith.constant 0 : i32
    %c0_i32_1 = arith.constant 0 : i32
    return %c0_i32, %arg0, %c0_i32_0 : i32, i32, i32
  }
  func.func @transform_1(%arg0: i32) -> (i32, i32, i32) {
    %c0_i32 = arith.constant 0 : i32
    %c0_i32_0 = arith.constant 0 : i32
    %c0_i32_1 = arith.constant 0 : i32
    %c0_i32_2 = arith.constant 0 : i32
    return %c0_i32, %c0_i32_0, %c0_i32_1 : i32, i32, i32
  }
  func.func @transform_2(%arg0: i32) -> (i32, i32, i32) {
    %c0_i32 = arith.constant 0 : i32
    %c0_i32_0 = arith.constant 0 : i32
    %c0_i32_1 = arith.constant 0 : i32
    %c0_i32_2 = arith.constant 0 : i32
    return %c0_i32, %c0_i32_0, %c0_i32_1 : i32, i32, i32
  }
  func.func @transform_3(%arg0: i32) -> (i32, i32, i32) {
    %c0_i32 = arith.constant 0 : i32
    %c0_i32_0 = arith.constant 0 : i32
    %c0_i32_1 = arith.constant 0 : i32
    return %c0_i32, %arg0, %c0_i32_0 : i32, i32, i32
  }
}

</mosaic_0001>

<llo_original>
// kernel: side_conv2d.5
$region0: #{side_conv2d.5}
  #allocation0 [shape = 'u32[]', space=smem, size = 0x4, offset = 0x4, fixed_abs, tag = 'smem constant byte address 0x4 - core index']
  #allocation1 [shape = 'u32[144,128]{1,0:T(1,128)}', space=vmem, size = 0x12000, scoped, tag = 'internal scratch']
  %s0 = inlined_call_operand.vmem [shape: f32[8,1,128], index: 0, kind: input, shape index: {}]
  %s1 = inlined_call_operand.vmem [shape: f32[8,1,128], index: 1, kind: input, shape index: {}]
  %s2 = inlined_call_operand.vmem [shape: f32[8,1,128], index: 2, kind: input, shape index: {}]
  %s3 = inlined_call_operand.vmem [shape: f32[8,1,128], index: 3, kind: output, shape index: {}]
  %s4 = sld [smem:[#allocation0]]
  $region22: #{side_conv2d.5} parent=0
    _
  %s6 = ssub.s32 1, %s4
  %s7 = scalar_select 0, %s6, %s4
  // Predicated region
  $region2: #{side_conv2d.5} parent=0 // pred_check
    _
  $region3: #{side_conv2d.5} parent=0 // pred_check_branch
    %9 = sbr.rel (0) target = $region5
  $region4: #{side_conv2d.5} parent=0 // pred_region
    _
  $region5: #{side_conv2d.5} parent=0 // pred_fallthru
    _
  // Predicated region
  $region6: #{side_conv2d.5} parent=0 // pred_check
    _
  $region7: #{side_conv2d.5} parent=0 // pred_check_branch
    %11 = sbr.rel (0) target = $region9
  $region8: #{side_conv2d.5} parent=0 // pred_region
    _
  $region9: #{side_conv2d.5} parent=0 // pred_fallthru
    _
  // Predicated region
  $region10: #{side_conv2d.5} parent=0 // pred_check
    _
  $region11: #{side_conv2d.5} parent=0 // pred_check_branch
    %13 = sbr.rel (0) target = $region13
  $region12: #{side_conv2d.5} parent=0 // pred_region
    _
  $region13: #{side_conv2d.5} parent=0 // pred_fallthru
    _
  %v14 = vld [vmem:[%s0] sm:$0x1]
  %v15 = vld [vmem:[%s0 + $0x1] sm:$0x1]
  %v16 = vld [vmem:[%s0 + $0x2] sm:$0x1]
  %v17 = vld [vmem:[%s0 + $0x3] sm:$0x1]
  %v18 = vld [vmem:[%s0 + $0x4] sm:$0x1]
  %v19 = vld [vmem:[%s0 + $0x5] sm:$0x1]
  %v20 = vld [vmem:[%s0 + $0x6] sm:$0x1]
  %v21 = vld [vmem:[%s0 + $0x7] sm:$0x1]
  %v22 = vld [vmem:[%s1] sm:$0x1]
  %v23 = vld [vmem:[%s1 + $0x1] sm:$0x1]
  %v24 = vld [vmem:[%s1 + $0x2] sm:$0x1]
  %v25 = vld [vmem:[%s1 + $0x3] sm:$0x1]
  %v26 = vld [vmem:[%s1 + $0x4] sm:$0x1]
  %v27 = vld [vmem:[%s1 + $0x5] sm:$0x1]
  %v28 = vld [vmem:[%s1 + $0x6] sm:$0x1]
  %v29 = vld [vmem:[%s1 + $0x7] sm:$0x1]
  %v30 = vmul.f32 %v14, %v22
  %v31 = vmul.f32 %v15, %v23
  %v32 = vmul.f32 %v16, %v24
  %v33 = vmul.f32 %v17, %v25
  %v34 = vmul.f32 %v18, %v26
  %v35 = vmul.f32 %v19, %v27
  %v36 = vmul.f32 %v20, %v28
  %v37 = vmul.f32 %v21, %v29
  %v38 = vld [vmem:[%s2] sm:$0x1]
  %v39 = vld [vmem:[%s2 + $0x1] sm:$0x1]
  %v40 = vld [vmem:[%s2 + $0x2] sm:$0x1]
  %v41 = vld [vmem:[%s2 + $0x3] sm:$0x1]
  %v42 = vld [vmem:[%s2 + $0x4] sm:$0x1]
  %v43 = vld [vmem:[%s2 + $0x5] sm:$0x1]
  %v44 = vld [vmem:[%s2 + $0x6] sm:$0x1]
  %v45 = vld [vmem:[%s2 + $0x7] sm:$0x1]
  %v46 = vadd.f32 %v30, %v38
  %v47 = vadd.f32 %v31, %v39
  %v48 = vadd.f32 %v32, %v40
  %v49 = vadd.f32 %v33, %v41
  %v50 = vadd.f32 %v34, %v42
  %v51 = vadd.f32 %v35, %v43
  %v52 = vadd.f32 %v36, %v44
  %v53 = vadd.f32 %v37, %v45
  %v54 = vmax.f32 %v46, 0.0
  %v55 = vmax.f32 %v47, 0.0
  %v56 = vmax.f32 %v48, 0.0
  %v57 = vmax.f32 %v49, 0.0
  %v58 = vmax.f32 %v50, 0.0
  %v59 = vmax.f32 %v51, 0.0
  %v60 = vmax.f32 %v52, 0.0
  %v61 = vmax.f32 %v53, 0.0
  %62 = vst [vmem:[%s3] sm:$0x1] %v54
  %63 = vst [vmem:[%s3 + $0x1] sm:$0x1] %v55
  %64 = vst [vmem:[%s3 + $0x2] sm:$0x1] %v56
  %65 = vst [vmem:[%s3 + $0x3] sm:$0x1] %v57
  %66 = vst [vmem:[%s3 + $0x4] sm:$0x1] %v58
  %67 = vst [vmem:[%s3 + $0x5] sm:$0x1] %v59
  %68 = vst [vmem:[%s3 + $0x6] sm:$0x1] %v60
  %69 = vst [vmem:[%s3 + $0x7] sm:$0x1] %v61
  // Predicated region
  $region14: #{side_conv2d.5} parent=0 // pred_check
    _
  $region15: #{side_conv2d.5} parent=0 // pred_check_branch
    %71 = sbr.rel (0) target = $region17
  $region16: #{side_conv2d.5} parent=0 // pred_region
    _
  $region17: #{side_conv2d.5} parent=0 // pred_fallthru
    _
  // Predicated region
  $region18: #{side_conv2d.5} parent=0 // pred_check
    _
  $region19: #{side_conv2d.5} parent=0 // pred_check_branch
    %73 = sbr.rel (0) target = $region21
  $region20: #{side_conv2d.5} parent=0 // pred_region
    _
  $region21: #{side_conv2d.5} parent=0 // pred_fallthru
    _

// kernel: side_conv2d.3
$region0: #{side_conv2d.3}
  #allocation0 [shape = 'u32[]', space=smem, size = 0x4, offset = 0x4, fixed_abs, tag = 'smem constant byte address 0x4 - core index']
  #allocation1 [shape = 'u32[144,128]{1,0:T(1,128)}', space=vmem, size = 0x12000, scoped, tag = 'internal scratch']
  %s0 = inlined_call_operand.vmem [shape: f32[9,4,1,128], index: 0, kind: input, shape index: {}]
  %s1 = inlined_call_operand.vmem [shape: f32[9,4,1,128], index: 1, kind: input, shape index: {}]
  %s2 = inlined_call_operand.vmem [shape: f32[4,1,128], index: 2, kind: input, shape index: {}]
  %s3 = inlined_call_operand.vmem [shape: f32[4,8,1,128], index: 3, kind: input, shape index: {}]
  %s4 = inlined_call_operand.vmem [shape: f32[8,1,128], index: 4, kind: input, shape index: {}]
  %s5 = inlined_call_operand.vmem [shape: f32[8,1,128], index: 5, kind: output, shape index: {0}]
  %s6 = inlined_call_operand.vmem [shape: f32[2,8,128], index: 6, kind: output, shape index: {1}]
  %7 = xla_tuple %s5, %s6
  %s8 = sld [smem:[#allocation0]]
  $region42: #{side_conv2d.3} parent=0
    _
  %s10 = ssub.s32 1, %s8
  %s11 = scalar_select 0, %s10, %s8
  // Predicated region
  $region2: #{side_conv2d.3} parent=0 // pred_check
    _
  $region3: #{side_conv2d.3} parent=0 // pred_check_branch
    %13 = sbr.rel (0) target = $region5
  $region4: #{side_conv2d.3} parent=0 // pred_region
    %s14 = sadd.s32 0, 0
    %p15 = scmp.lt.s32.totalorder %s14, 0
    %s16 = scalar_select %p15, %s14, 0
    %s17 = scalar_lea.vmem %s0, %s16
    %s18 = sadd.s32 0, 0
  $region5: #{side_conv2d.3} parent=0 // pred_fallthru
    _
  // Predicated region
  $region6: #{side_conv2d.3} parent=0 // pred_check
    _
  $region7: #{side_conv2d.3} parent=0 // pred_check_branch
    %20 = sbr.rel (0) target = $region9
  $region8: #{side_conv2d.3} parent=0 // pred_region
    _
  $region9: #{side_conv2d.3} parent=0 // pred_fallthru
    _
  // Predicated region
  $region10: #{side_conv2d.3} parent=0 // pred_check
    _
  $region11: #{side_conv2d.3} parent=0 // pred_check_branch
    %22 = sbr.rel (0) target = $region13
  $region12: #{side_conv2d.3} parent=0 // pred_region
    _
  $region13: #{side_conv2d.3} parent=0 // pred_fallthru
    _
  // Predicated region
  $region14: #{side_conv2d.3} parent=0 // pred_check
    _
  $region15: #{side_conv2d.3} parent=0 // pred_check_branch
    %24 = sbr.rel (0) target = $region17
  $region16: #{side_conv2d.3} parent=0 // pred_region
    _
  $region17: #{side_conv2d.3} parent=0 // pred_fallthru
    _
  // Predicated region
  $region18: #{side_conv2d.3} parent=0 // pred_check
    _
  $region19: #{side_conv2d.3} parent=0 // pred_check_branch
    %26 = sbr.rel (0) target = $region21
  $region20: #{side_conv2d.3} parent=0 // pred_region
    _
  $region21: #{side_conv2d.3} parent=0 // pred_fallthru
    _
  %s27 = sadd.s32 0, 0
  %p28 = scmp.lt.s32.totalorder %s27, 0
  %s29 = scalar_select %p28, %s27, 0
  %s30 = scalar_lea.vmem %s0, %s29
  %s31 = sadd.s32 0, 0
  %p32 = scmp.lt.s32.totalorder %s31, 0
  %s33 = scalar_select %p32, %s31, 0
  %s34 = scalar_lea.vmem %s5, %s33
  %s35 = sadd.s32 0, 0
  %p36 = scmp.lt.s32.totalorder %s35, 0
  %s37 = scalar_select %p36, %s35, 0
  %s38 = scalar_lea.vmem %s0, %s37
  %s39 = sadd.s32 0, 0
  %s40 = sadd.s32 0, 0
  %p41 = scmp.lt.s32.totalorder %s40, 0
  %s42 = scalar_select %p41, %s40, 0
  %s43 = scalar_lea.vmem %s5, %s42
  %s44 = sadd.s32 0, 0
  %v45 = vld [vmem:[%s38] sm:$0x1]
  %v46 = vld [vmem:[%s38 + $0x1] sm:$0x1]
  %v47 = vld [vmem:[%s38 + $0x2] sm:$0x1]
  %v48 = vld [vmem:[%s38 + $0x3] sm:$0x1]
  %v49 = vld [vmem:[%s1] sm:$0x1]
  %v50 = vld [vmem:[%s1 + $0x1] sm:$0x1]
  %v51 = vld [vmem:[%s1 + $0x2] sm:$0x1]
  %v52 = vld [vmem:[%s1 + $0x3] sm:$0x1]
  %v53 = vmul.f32 %v45, %v49
  %v54 = vmul.f32 %v46, %v50
  %v55 = vmul.f32 %v47, %v51
  %v56 = vmul.f32 %v48, %v52
  %s57 = scalar_lea.vmem %s38, 4
  %v58 = vld [vmem:[%s57] sm:$0x1]
  %v59 = vld [vmem:[%s57 + $0x1] sm:$0x1]
  %v60 = vld [vmem:[%s57 + $0x2] sm:$0x1]
  %v61 = vld [vmem:[%s57 + $0x3] sm:$0x1]
  %s62 = scalar_lea.vmem %s1, 4
  %v63 = vld [vmem:[%s62] sm:$0x1]
  %v64 = vld [vmem:[%s62 + $0x1] sm:$0x1]
  %v65 = vld [vmem:[%s62 + $0x2] sm:$0x1]
  %v66 = vld [vmem:[%s62 + $0x3] sm:$0x1]
  %v67 = vmul.f32 %v58, %v63
  %v68 = vmul.f32 %v59, %v64
  %v69 = vmul.f32 %v60, %v65
  %v70 = vmul.f32 %v61, %v66
  %s71 = scalar_lea.vmem %s38, 8
  %v72 = vld [vmem:[%s71] sm:$0x1]
  %v73 = vld [vmem:[%s71 + $0x1] sm:$0x1]
  %v74 = vld [vmem:[%s71 + $0x2] sm:$0x1]
  %v75 = vld [vmem:[%s71 + $0x3] sm:$0x1]
  %s76 = scalar_lea.vmem %s1, 8
  %v77 = vld [vmem:[%s76] sm:$0x1]
  %v78 = vld [vmem:[%s76 + $0x1] sm:$0x1]
  %v79 = vld [vmem:[%s76 + $0x2] sm:$0x1]
  %v80 = vld [vmem:[%s76 + $0x3] sm:$0x1]
  %v81 = vmul.f32 %v72, %v77
  %v82 = vmul.f32 %v73, %v78
  %v83 = vmul.f32 %v74, %v79
  %v84 = vmul.f32 %v75, %v80
  %s85 = scalar_lea.vmem %s38, 12
  %v86 = vld [vmem:[%s85] sm:$0x1]
  %v87 = vld [vmem:[%s85 + $0x1] sm:$0x1]
  %v88 = vld [vmem:[%s85 + $0x2] sm:$0x1]
  %v89 = vld [vmem:[%s85 + $0x3] sm:$0x1]
  %s90 = scalar_lea.vmem %s1, 12
  %v91 = vld [vmem:[%s90] sm:$0x1]
  %v92 = vld [vmem:[%s90 + $0x1] sm:$0x1]
  %v93 = vld [vmem:[%s90 + $0x2] sm:$0x1]
  %v94 = vld [vmem:[%s90 + $0x3] sm:$0x1]
  %v95 = vmul.f32 %v86, %v91
  %v96 = vmul.f32 %v87, %v92
  %v97 = vmul.f32 %v88, %v93
  %v98 = vmul.f32 %v89, %v94
  %v99 = vadd.f32 %v53, %v95
  %v100 = vadd.f32 %v54, %v96
  %v101 = vadd.f32 %v55, %v97
  %v102 = vadd.f32 %v56, %v98
  %s103 = scalar_lea.vmem %s38, 16
  %v104 = vld [vmem:[%s103] sm:$0x1]
  %v105 = vld [vmem:[%s103 + $0x1] sm:$0x1]
  %v106 = vld [vmem:[%s103 + $0x2] sm:$0x1]
  %v107 = vld [vmem:[%s103 + $0x3] sm:$0x1]
  %s108 = scalar_lea.vmem %s1, 16
  %v109 = vld [vmem:[%s108] sm:$0x1]
  %v110 = vld [vmem:[%s108 + $0x1] sm:$0x1]
  %v111 = vld [vmem:[%s108 + $0x2] sm:$0x1]
  %v112 = vld [vmem:[%s108 + $0x3] sm:$0x1]
  %v113 = vmul.f32 %v104, %v109
  %v114 = vmul.f32 %v105, %v110
  %v115 = vmul.f32 %v106, %v111
  %v116 = vmul.f32 %v107, %v112
  %v117 = vadd.f32 %v67, %v113
  %v118 = vadd.f32 %v68, %v114
  %v119 = vadd.f32 %v69, %v115
  %v120 = vadd.f32 %v70, %v116
  %s121 = scalar_lea.vmem %s38, 20
  %v122 = vld [vmem:[%s121] sm:$0x1]
  %v123 = vld [vmem:[%s121 + $0x1] sm:$0x1]
  %v124 = vld [vmem:[%s121 + $0x2] sm:$0x1]
  %v125 = vld [vmem:[%s121 + $0x3] sm:$0x1]
  %s126 = scalar_lea.vmem %s1, 20
  %v127 = vld [vmem:[%s126] sm:$0x1]
  %v128 = vld [vmem:[%s126 + $0x1] sm:$0x1]
  %v129 = vld [vmem:[%s126 + $0x2] sm:$0x1]
  %v130 = vld [vmem:[%s126 + $0x3] sm:$0x1]
  %v131 = vmul.f32 %v122, %v127
  %v132 = vmul.f32 %v123, %v128
  %v133 = vmul.f32 %v124, %v129
  %v134 = vmul.f32 %v125, %v130
  %v135 = vadd.f32 %v81, %v131
  %v136 = vadd.f32 %v82, %v132
  %v137 = vadd.f32 %v83, %v133
  %v138 = vadd.f32 %v84, %v134
  %s139 = scalar_lea.vmem %s38, 24
  %v140 = vld [vmem:[%s139] sm:$0x1]
  %v141 = vld [vmem:[%s139 + $0x1] sm:$0x1]
  %v142 = vld [vmem:[%s139 + $0x2] sm:$0x1]
  %v143 = vld [vmem:[%s139 + $0x3] sm:$0x1]
  %s144 = scalar_lea.vmem %s1, 24
  %v145 = vld [vmem:[%s144] sm:$0x1]
  %v146 = vld [vmem:[%s144 + $0x1] sm:$0x1]
  %v147 = vld [vmem:[%s144 + $0x2] sm:$0x1]
  %v148 = vld [vmem:[%s144 + $0x3] sm:$0x1]
  %v149 = vmul.f32 %v140, %v145
  %v150 = vmul.f32 %v141, %v146
  %v151 = vmul.f32 %v142, %v147
  %v152 = vmul.f32 %v143, %v148
  %v153 = vadd.f32 %v99, %v149
  %v154 = vadd.f32 %v100, %v150
  %v155 = vadd.f32 %v101, %v151
  %v156 = vadd.f32 %v102, %v152
  %s157 = scalar_lea.vmem %s38, 28
  %v158 = vld [vmem:[%s157] sm:$0x1]
  %v159 = vld [vmem:[%s157 + $0x1] sm:$0x1]
  %v160 = vld [vmem:[%s157 + $0x2] sm:$0x1]
  %v161 = vld [vmem:[%s157 + $0x3] sm:$0x1]
  %s162 = scalar_lea.vmem %s1, 28
  %v163 = vld [vmem:[%s162] sm:$0x1]
  %v164 = vld [vmem:[%s162 + $0x1] sm:$0x1]
  %v165 = vld [vmem:[%s162 + $0x2] sm:$0x1]
  %v166 = vld [vmem:[%s162 + $0x3] sm:$0x1]
  %v167 = vmul.f32 %v158, %v163
  %v168 = vmul.f32 %v159, %v164
  %v169 = vmul.f32 %v160, %v165
  %v170 = vmul.f32 %v161, %v166
  %v171 = vadd.f32 %v117, %v167
  %v172 = vadd.f32 %v118, %v168
  %v173 = vadd.f32 %v119, %v169
  %v174 = vadd.f32 %v120, %v170
  %s175 = scalar_lea.vmem %s38, 32
  %v176 = vld [vmem:[%s175] sm:$0x1]
  %v177 = vld [vmem:[%s175 + $0x1] sm:$0x1]
  %v178 = vld [vmem:[%s175 + $0x2] sm:$0x1]
  %v179 = vld [vmem:[%s175 + $0x3] sm:$0x1]
  %s180 = scalar_lea.vmem %s1, 32
  %v181 = vld [vmem:[%s180] sm:$0x1]
  %v182 = vld [vmem:[%s180 + $0x1] sm:$0x1]
  %v183 = vld [vmem:[%s180 + $0x2] sm:$0x1]
  %v184 = vld [vmem:[%s180 + $0x3] sm:$0x1]
  %v185 = vmul.f32 %v176, %v181
  %v186 = vmul.f32 %v177, %v182
  %v187 = vmul.f32 %v178, %v183
  %v188 = vmul.f32 %v179, %v184
  %v189 = vadd.f32 %v135, %v185
  %v190 = vadd.f32 %v136, %v186
  %v191 = vadd.f32 %v137, %v187
  %v192 = vadd.f32 %v138, %v188
  %v193 = vadd.f32 %v153, %v171
  %v194 = vadd.f32 %v154, %v172
  %v195 = vadd.f32 %v155, %v173
  %v196 = vadd.f32 %v156, %v174
  %v197 = vadd.f32 %v193, %v189
  %v198 = vadd.f32 %v194, %v190
  %v199 = vadd.f32 %v195, %v191
  %v200 = vadd.f32 %v196, %v192
  %v201 = vld [vmem:[%s2] sm:$0x1]
  %v202 = vld [vmem:[%s2 + $0x1] sm:$0x1]
  %v203 = vld [vmem:[%s2 + $0x2] sm:$0x1]
  %v204 = vld [vmem:[%s2 + $0x3] sm:$0x1]
  %v205 = vadd.f32 %v197, %v201
  %v206 = vadd.f32 %v198, %v202
  %v207 = vadd.f32 %v199, %v203
  %v208 = vadd.f32 %v200, %v204
  %v209 = vld [vmem:[%s3] sm:$0x1]
  %v210 = vld [vmem:[%s3 + $0x1] sm:$0x1]
  %v211 = vld [vmem:[%s3 + $0x2] sm:$0x1]
  %v212 = vld [vmem:[%s3 + $0x3] sm:$0x1]
  %v213 = vld [vmem:[%s3 + $0x4] sm:$0x1]
  %v214 = vld [vmem:[%s3 + $0x5] sm:$0x1]
  %v215 = vld [vmem:[%s3 + $0x6] sm:$0x1]
  %v216 = vld [vmem:[%s3 + $0x7] sm:$0x1]
  %v217 = vmul.f32 %v205, %v209
  %v218 = vmul.f32 %v205, %v210
  %v219 = vmul.f32 %v205, %v211
  %v220 = vmul.f32 %v205, %v212
  %v221 = vmul.f32 %v205, %v213
  %v222 = vmul.f32 %v205, %v214
  %v223 = vmul.f32 %v205, %v215
  %v224 = vmul.f32 %v205, %v216
  %s225 = scalar_lea.vmem %s3, 8
  %v226 = vld [vmem:[%s225] sm:$0x1]
  %v227 = vld [vmem:[%s225 + $0x1] sm:$0x1]
  %v228 = vld [vmem:[%s225 + $0x2] sm:$0x1]
  %v229 = vld [vmem:[%s225 + $0x3] sm:$0x1]
  %v230 = vld [vmem:[%s225 + $0x4] sm:$0x1]
  %v231 = vld [vmem:[%s225 + $0x5] sm:$0x1]
  %v232 = vld [vmem:[%s225 + $0x6] sm:$0x1]
  %v233 = vld [vmem:[%s225 + $0x7] sm:$0x1]
  %v234 = vmul.f32 %v206, %v226
  %v235 = vmul.f32 %v206, %v227
  %v236 = vmul.f32 %v206, %v228
  %v237 = vmul.f32 %v206, %v229
  %v238 = vmul.f32 %v206, %v230
  %v239 = vmul.f32 %v206, %v231
  %v240 = vmul.f32 %v206, %v232
  %v241 = vmul.f32 %v206, %v233
  %s242 = scalar_lea.vmem %s3, 16
  %v243 = vld [vmem:[%s242] sm:$0x1]
  %v244 = vld [vmem:[%s242 + $0x1] sm:$0x1]
  %v245 = vld [vmem:[%s242 + $0x2] sm:$0x1]
  %v246 = vld [vmem:[%s242 + $0x3] sm:$0x1]
  %v247 = vld [vmem:[%s242 + $0x4] sm:$0x1]
  %v248 = vld [vmem:[%s242 + $0x5] sm:$0x1]
  %v249 = vld [vmem:[%s242 + $0x6] sm:$0x1]
  %v250 = vld [vmem:[%s242 + $0x7] sm:$0x1]
  %v251 = vmul.f32 %v207, %v243
  %v252 = vmul.f32 %v207, %v244
  %v253 = vmul.f32 %v207, %v245
  %v254 = vmul.f32 %v207, %v246
  %v255 = vmul.f32 %v207, %v247
  %v256 = vmul.f32 %v207, %v248
  %v257 = vmul.f32 %v207, %v249
  %v258 = vmul.f32 %v207, %v250
  %v259 = vadd.f32 %v217, %v251
  %v260 = vadd.f32 %v218, %v252
  %v261 = vadd.f32 %v219, %v253
  %v262 = vadd.f32 %v220, %v254
  %v263 = vadd.f32 %v221, %v255
  %v264 = vadd.f32 %v222, %v256
  %v265 = vadd.f32 %v223, %v257
  %v266 = vadd.f32 %v224, %v258
  %s267 = scalar_lea.vmem %s3, 24
  %v268 = vld [vmem:[%s267] sm:$0x1]
  %v269 = vld [vmem:[%s267 + $0x1] sm:$0x1]
  %v270 = vld [vmem:[%s267 + $0x2] sm:$0x1]
  %v271 = vld [vmem:[%s267 + $0x3] sm:$0x1]
  %v272 = vld [vmem:[%s267 + $0x4] sm:$0x1]
  %v273 = vld [vmem:[%s267 + $0x5] sm:$0x1]
  %v274 = vld [vmem:[%s267 + $0x6] sm:$0x1]
  %v275 = vld [vmem:[%s267 + $0x7] sm:$0x1]
  %v276 = vmul.f32 %v208, %v268
  %v277 = vmul.f32 %v208, %v269
  %v278 = vmul.f32 %v208, %v270
  %v279 = vmul.f32 %v208, %v271
  %v280 = vmul.f32 %v208, %v272
  %v281 = vmul.f32 %v208, %v273
  %v282 = vmul.f32 %v208, %v274
  %v283 = vmul.f32 %v208, %v275
  %v284 = vadd.f32 %v234, %v276
  %v285 = vadd.f32 %v235, %v277
  %v286 = vadd.f32 %v236, %v278
  %v287 = vadd.f32 %v237, %v279
  %v288 = vadd.f32 %v238, %v280
  %v289 = vadd.f32 %v239, %v281
  %v290 = vadd.f32 %v240, %v282
  %v291 = vadd.f32 %v241, %v283
  %v292 = vadd.f32 %v259, %v284
  %v293 = vadd.f32 %v260, %v285
  %v294 = vadd.f32 %v261, %v286
  %v295 = vadd.f32 %v262, %v287
  %v296 = vadd.f32 %v263, %v288
  %v297 = vadd.f32 %v264, %v289
  %v298 = vadd.f32 %v265, %v290
  %v299 = vadd.f32 %v266, %v291
  %v300 = vld [vmem:[%s4] sm:$0x1]
  %v301 = vld [vmem:[%s4 + $0x1] sm:$0x1]
  %v302 = vld [vmem:[%s4 + $0x2] sm:$0x1]
  %v303 = vld [vmem:[%s4 + $0x3] sm:$0x1]
  %v304 = vld [vmem:[%s4 + $0x4] sm:$0x1]
  %v305 = vld [vmem:[%s4 + $0x5] sm:$0x1]
  %v306 = vld [vmem:[%s4 + $0x6] sm:$0x1]
  %v307 = vld [vmem:[%s4 + $0x7] sm:$0x1]
  %v308 = vadd.f32 %v292, %v300
  %v309 = vadd.f32 %v293, %v301
  %v310 = vadd.f32 %v294, %v302
  %v311 = vadd.f32 %v295, %v303
  %v312 = vadd.f32 %v296, %v304
  %v313 = vadd.f32 %v297, %v305
  %v314 = vadd.f32 %v298, %v306
  %v315 = vadd.f32 %v299, %v307
  %316 = vst [vmem:[%s43] sm:$0x1] %v308
  %317 = vst [vmem:[%s43 + $0x1] sm:$0x1] %v309
  %318 = vst [vmem:[%s43 + $0x2] sm:$0x1] %v310
  %319 = vst [vmem:[%s43 + $0x3] sm:$0x1] %v311
  %320 = vst [vmem:[%s43 + $0x4] sm:$0x1] %v312
  %321 = vst [vmem:[%s43 + $0x5] sm:$0x1] %v313
  %322 = vst [vmem:[%s43 + $0x6] sm:$0x1] %v314
  %323 = vst [vmem:[%s43 + $0x7] sm:$0x1] %v315
  %p324 = scmp.eq.s32.totalorder 0, 0
  // Predicated region
  $region22: #{side_conv2d.3} parent=0 // pred_check
    %p325 = pneg %p324
  $region23: #{side_conv2d.3} parent=0 // pred_check_branch
    %327 = sbr.rel (%p325) target = $region25
  $region24: #{side_conv2d.3} parent=0 // pred_region
    %328 = vst [vmem:[%s6] sm:$0xff] 0.0
    %329 = vst [vmem:[%s6 + $0x8] sm:$0xff] 0.0
  $region25: #{side_conv2d.3} parent=0 // pred_fallthru
    _
  %v330 = vld [vmem:[%s6] sm:$0xff]
  %v331 = vadd.f32 %v308, 0.0
  %v332 = vadd.f32 %v309, 0.0
  %v333 = vadd.f32 %v310, 0.0
  %v334 = vadd.f32 %v311, 0.0
  %v335 = vadd.f32 %v312, 0.0
  %v336 = vadd.f32 %v313, 0.0
  %v337 = vadd.f32 %v314, 0.0
  %v338 = vadd.f32 %v315, 0.0
  %v347 = vcombine.low %v331, %v332
  %v348 = vcombine.low %v333, %v334
  %v349 = vcombine.low %v335, %v336
  %v350 = vcombine.low %v337, %v338
  %v352 = vunpack.c.l.s4 1966171168
  %v353 = vunpack.c.0.s8 %v352
  %v354 = vlaneseq
  %v355 = vshrl.u32 %v354, 7
  %v356 = vsub.s32 %v353, %v355
  %v357 = vrot.slane %v347, %v356
  %v359 = vunpack.c.l.s4 1966171168
  %v360 = vunpack.c.0.s8 %v359
  %v361 = vlaneseq
  %v362 = vshrl.u32 %v361, 7
  %v363 = vsub.s32 %v360, %v362
  %v364 = vrot.slane %v348, %v363
  %v366 = vunpack.c.l.s4 1966171168
  %v367 = vunpack.c.0.s8 %v366
  %v368 = vlaneseq
  %v369 = vshrl.u32 %v368, 7
  %v370 = vsub.s32 %v367, %v369
  %v371 = vrot.slane %v349, %v370
  %v373 = vunpack.c.l.s4 1966171168
  %v374 = vunpack.c.0.s8 %v373
  %v375 = vlaneseq
  %v376 = vshrl.u32 %v375, 7
  %v377 = vsub.s32 %v374, %v376
  %v378 = vrot.slane %v350, %v377
  %v379 = vcombine.low %v357, %v364
  %v380 = vcombine.low %v371, %v378
  %v382 = vunpack.c.l.s4 1966171168
  %v383 = vunpack.c.0.s8 %v382
  %v384 = vlaneseq
  %v385 = vshrl.u32 %v384, 7
  %v386 = vsub.s32 %v383, %v385
  %v387 = vrot.slane %v379, %v386
  %v389 = vunpack.c.l.s4 1966171168
  %v390 = vunpack.c.0.s8 %v389
  %v391 = vlaneseq
  %v392 = vshrl.u32 %v391, 7
  %v393 = vsub.s32 %v390, %v392
  %v394 = vrot.slane %v380, %v393
  %v395 = vcombine.low %v387, %v394
  %v397 = vadd.f32 %v330, %v395
  %398 = vst [vmem:[%s6] sm:$0xff] %v397
  %s399 = scalar_lea.vmem %s6, 8
  %v400 = vld [vmem:[%s399] sm:$0xff]
  %v401 = vmul.f32 %v308, %v308
  %v402 = vmul.f32 %v309, %v309
  %v403 = vmul.f32 %v310, %v310
  %v404 = vmul.f32 %v311, %v311
  %v405 = vmul.f32 %v312, %v312
  %v406 = vmul.f32 %v313, %v313
  %v407 = vmul.f32 %v314, %v314
  %v408 = vmul.f32 %v315, %v315
  %v409 = vadd.f32 %v401, 0.0
  %v410 = vadd.f32 %v402, 0.0
  %v411 = vadd.f32 %v403, 0.0
  %v412 = vadd.f32 %v404, 0.0
  %v413 = vadd.f32 %v405, 0.0
  %v414 = vadd.f32 %v406, 0.0
  %v415 = vadd.f32 %v407, 0.0
  %v416 = vadd.f32 %v408, 0.0
  %v425 = vcombine.low %v409, %v410
  %v426 = vcombine.low %v411, %v412
  %v427 = vcombine.low %v413, %v414
  %v428 = vcombine.low %v415, %v416
  %v430 = vunpack.c.l.s4 1966171168
  %v431 = vunpack.c.0.s8 %v430
  %v432 = vlaneseq
  %v433 = vshrl.u32 %v432, 7
  %v434 = vsub.s32 %v431, %v433
  %v435 = vrot.slane %v425, %v434
  %v437 = vunpack.c.l.s4 1966171168
  %v438 = vunpack.c.0.s8 %v437
  %v439 = vlaneseq
  %v440 = vshrl.u32 %v439, 7
  %v441 = vsub.s32 %v438, %v440
  %v442 = vrot.slane %v426, %v441
  %v444 = vunpack.c.l.s4 1966171168
  %v445 = vunpack.c.0.s8 %v444
  %v446 = vlaneseq
  %v447 = vshrl.u32 %v446, 7
  %v448 = vsub.s32 %v445, %v447
  %v449 = vrot.slane %v427, %v448
  %v451 = vunpack.c.l.s4 1966171168
  %v452 = vunpack.c.0.s8 %v451
  %v453 = vlaneseq
  %v454 = vshrl.u32 %v453, 7
  %v455 = vsub.s32 %v452, %v454
  %v456 = vrot.slane %v428, %v455
  %v457 = vcombine.low %v435, %v442
  %v458 = vcombine.low %v449, %v456
  %v460 = vunpack.c.l.s4 1966171168
  %v461 = vunpack.c.0.s8 %v460
  %v462 = vlaneseq
  %v463 = vshrl.u32 %v462, 7
  %v464 = vsub.s32 %v461, %v463
  %v465 = vrot.slane %v457, %v464
  %v467 = vunpack.c.l.s4 1966171168
  %v468 = vunpack.c.0.s8 %v467
  %v469 = vlaneseq
  %v470 = vshrl.u32 %v469, 7
  %v471 = vsub.s32 %v468, %v470
  %v472 = vrot.slane %v458, %v471
  %v473 = vcombine.low %v465, %v472
  %v475 = vadd.f32 %v400, %v473
  %476 = vst [vmem:[%s399] sm:$0xff] %v475
  %s477 = sadd.s32 0, 0
  %p478 = scmp.lt.s32.totalorder %s477, 0
  %s479 = scalar_select %p478, %s477, 0
  %s480 = scalar_lea.vmem %s5, %s479
  // Predicated region
  $region26: #{side_conv2d.3} parent=0 // pred_check
    _
  $region27: #{side_conv2d.3} parent=0 // pred_check_branch
    %482 = sbr.rel (0) target = $region29
  $region28: #{side_conv2d.3} parent=0 // pred_region
    %s483 = sadd.s32 0, 0
  $region29: #{side_conv2d.3} parent=0 // pred_fallthru
    _
  // Predicated region
  $region30: #{side_conv2d.3} parent=0 // pred_check
    _
  $region31: #{side_conv2d.3} parent=0 // pred_check_branch
    %485 = sbr.rel (0) target = $region33
  $region32: #{side_conv2d.3} parent=0 // pred_region
    _
  $region33: #{side_conv2d.3} parent=0 // pred_fallthru
    _
  // Predicated region
  $region34: #{side_conv2d.3} parent=0 // pred_check
    _
  $region35: #{side_conv2d.3} parent=0 // pred_check_branch
    %487 = sbr.rel (0) target = $region37
  $region36: #{side_conv2d.3} parent=0 // pred_region
    %s488 = sadd.s32 0, 0
    %p489 = scmp.lt.s32.totalorder %s488, 0
    %s490 = scalar_select %p489, %s488, 0
    %s491 = scalar_lea.vmem %s5, %s490
  $region37: #{side_conv2d.3} parent=0 // pred_fallthru
    _
  // Predicated region
  $region38: #{side_conv2d.3} parent=0 // pred_check
    _
  $region39: #{side_conv2d.3} parent=0 // pred_check_branch
    %493 = sbr.rel (0) target = $region41
  $region40: #{side_conv2d.3} parent=0 // pred_region
    _
  $region41: #{side_conv2d.3} parent=0 // pred_fallthru
    _

// kernel: side_conv2d.4
$region0: #{side_conv2d.4}
  #allocation0 [shape = 'u32[]', space=smem, size = 0x4, offset = 0x4, fixed_abs, tag = 'smem constant byte address 0x4 - core index']
  #allocation1 [shape = 'u32[144,128]{1,0:T(1,128)}', space=vmem, size = 0x12000, scoped, tag = 'internal scratch']
  %s0 = inlined_call_operand.vmem [shape: f32[8,1,128], index: 0, kind: input, shape index: {}]
  %s1 = inlined_call_operand.vmem [shape: f32[8,1,128], index: 1, kind: input, shape index: {}]
  %s2 = inlined_call_operand.vmem [shape: f32[8,1,128], index: 2, kind: input, shape index: {}]
  %s3 = inlined_call_operand.vmem [shape: f32[8,1,128], index: 3, kind: input, shape index: {}]
  %s4 = inlined_call_operand.vmem [shape: f32[16,8,1,128], index: 4, kind: input, shape index: {}]
  %s5 = inlined_call_operand.vmem [shape: f32[8,1,128], index: 5, kind: input, shape index: {}]
  %s6 = inlined_call_operand.vmem [shape: f32[8,1,128], index: 6, kind: output, shape index: {0}]
  %s7 = inlined_call_operand.vmem [shape: f32[2,8,128], index: 7, kind: output, shape index: {1}]
  %8 = xla_tuple %s6, %s7
  %s9 = sld [smem:[#allocation0]]
  $region46: #{side_conv2d.4} parent=0
    _
  %s11 = ssub.s32 1, %s9
  %s12 = scalar_select 0, %s11, %s9
  // Predicated region
  $region2: #{side_conv2d.4} parent=0 // pred_check
    _
  $region3: #{side_conv2d.4} parent=0 // pred_check_branch
    %14 = sbr.rel (0) target = $region5
  $region4: #{side_conv2d.4} parent=0 // pred_region
    %s15 = sadd.s32 0, 0
    %p16 = scmp.lt.s32.totalorder %s15, 0
    %s17 = scalar_select %p16, %s15, 0
    %s18 = scalar_lea.vmem %s0, %s17
    %s19 = sadd.s32 0, 0
  $region5: #{side_conv2d.4} parent=0 // pred_fallthru
    _
  // Predicated region
  $region6: #{side_conv2d.4} parent=0 // pred_check
    _
  $region7: #{side_conv2d.4} parent=0 // pred_check_branch
    %21 = sbr.rel (0) target = $region9
  $region8: #{side_conv2d.4} parent=0 // pred_region
    %s22 = sadd.s32 0, 0
    %p23 = scmp.lt.s32.totalorder %s22, 0
    %s24 = scalar_select %p23, %s22, 0
    %s25 = scalar_lea.vmem %s1, %s24
    %s26 = sadd.s32 0, 0
  $region9: #{side_conv2d.4} parent=0 // pred_fallthru
    _
  // Predicated region
  $region10: #{side_conv2d.4} parent=0 // pred_check
    _
  $region11: #{side_conv2d.4} parent=0 // pred_check_branch
    %28 = sbr.rel (0) target = $region13
  $region12: #{side_conv2d.4} parent=0 // pred_region
    _
  $region13: #{side_conv2d.4} parent=0 // pred_fallthru
    _
  // Predicated region
  $region14: #{side_conv2d.4} parent=0 // pred_check
    _
  $region15: #{side_conv2d.4} parent=0 // pred_check_branch
    %30 = sbr.rel (0) target = $region17
  $region16: #{side_conv2d.4} parent=0 // pred_region
    _
  $region17: #{side_conv2d.4} parent=0 // pred_fallthru
    _
  // Predicated region
  $region18: #{side_conv2d.4} parent=0 // pred_check
    _
  $region19: #{side_conv2d.4} parent=0 // pred_check_branch
    %32 = sbr.rel (0) target = $region21
  $region20: #{side_conv2d.4} parent=0 // pred_region
    _
  $region21: #{side_conv2d.4} parent=0 // pred_fallthru
    _
  // Predicated region
  $region22: #{side_conv2d.4} parent=0 // pred_check
    _
  $region23: #{side_conv2d.4} parent=0 // pred_check_branch
    %34 = sbr.rel (0) target = $region25
  $region24: #{side_conv2d.4} parent=0 // pred_region
    _
  $region25: #{side_conv2d.4} parent=0 // pred_fallthru
    _
  %s35 = sadd.s32 0, 0
  %p36 = scmp.lt.s32.totalorder %s35, 0
  %s37 = scalar_select %p36, %s35, 0
  %s38 = scalar_lea.vmem %s0, %s37
  %s39 = sadd.s32 0, 0
  %p40 = scmp.lt.s32.totalorder %s39, 0
  %s41 = scalar_select %p40, %s39, 0
  %s42 = scalar_lea.vmem %s1, %s41
  %s43 = sadd.s32 0, 0
  %p44 = scmp.lt.s32.totalorder %s43, 0
  %s45 = scalar_select %p44, %s43, 0
  %s46 = scalar_lea.vmem %s6, %s45
  %s47 = sadd.s32 0, 0
  %p48 = scmp.lt.s32.totalorder %s47, 0
  %s49 = scalar_select %p48, %s47, 0
  %s50 = scalar_lea.vmem %s0, %s49
  %s51 = sadd.s32 0, 0
  %s52 = sadd.s32 0, 0
  %p53 = scmp.lt.s32.totalorder %s52, 0
  %s54 = scalar_select %p53, %s52, 0
  %s55 = scalar_lea.vmem %s1, %s54
  %s56 = sadd.s32 0, 0
  %s57 = sadd.s32 0, 0
  %p58 = scmp.lt.s32.totalorder %s57, 0
  %s59 = scalar_select %p58, %s57, 0
  %s60 = scalar_lea.vmem %s6, %s59
  %s61 = sadd.s32 0, 0
  %v62 = vld [vmem:[%s55] sm:$0x1]
  %v63 = vld [vmem:[%s4] sm:$0x1]
  %v64 = vld [vmem:[%s4 + $0x1] sm:$0x1]
  %v65 = vld [vmem:[%s4 + $0x2] sm:$0x1]
  %v66 = vld [vmem:[%s4 + $0x3] sm:$0x1]
  %v67 = vld [vmem:[%s4 + $0x4] sm:$0x1]
  %v68 = vld [vmem:[%s4 + $0x5] sm:$0x1]
  %v69 = vld [vmem:[%s4 + $0x6] sm:$0x1]
  %v70 = vld [vmem:[%s4 + $0x7] sm:$0x1]
  %v71 = vmul.f32 %v62, %v63
  %v72 = vmul.f32 %v62, %v64
  %v73 = vmul.f32 %v62, %v65
  %v74 = vmul.f32 %v62, %v66
  %v75 = vmul.f32 %v62, %v67
  %v76 = vmul.f32 %v62, %v68
  %v77 = vmul.f32 %v62, %v69
  %v78 = vmul.f32 %v62, %v70
  %s79 = scalar_lea.vmem %s55, 1
  %v80 = vld [vmem:[%s79] sm:$0x1]
  %s81 = scalar_lea.vmem %s4, 8
  %v82 = vld [vmem:[%s81] sm:$0x1]
  %v83 = vld [vmem:[%s81 + $0x1] sm:$0x1]
  %v84 = vld [vmem:[%s81 + $0x2] sm:$0x1]
  %v85 = vld [vmem:[%s81 + $0x3] sm:$0x1]
  %v86 = vld [vmem:[%s81 + $0x4] sm:$0x1]
  %v87 = vld [vmem:[%s81 + $0x5] sm:$0x1]
  %v88 = vld [vmem:[%s81 + $0x6] sm:$0x1]
  %v89 = vld [vmem:[%s81 + $0x7] sm:$0x1]
  %v90 = vmul.f32 %v80, %v82
  %v91 = vmul.f32 %v80, %v83
  %v92 = vmul.f32 %v80, %v84
  %v93 = vmul.f32 %v80, %v85
  %v94 = vmul.f32 %v80, %v86
  %v95 = vmul.f32 %v80, %v87
  %v96 = vmul.f32 %v80, %v88
  %v97 = vmul.f32 %v80, %v89
  %s98 = scalar_lea.vmem %s55, 2
  %v99 = vld [vmem:[%s98] sm:$0x1]
  %s100 = scalar_lea.vmem %s4, 16
  %v101 = vld [vmem:[%s100] sm:$0x1]
  %v102 = vld [vmem:[%s100 + $0x1] sm:$0x1]
  %v103 = vld [vmem:[%s100 + $0x2] sm:$0x1]
  %v104 = vld [vmem:[%s100 + $0x3] sm:$0x1]
  %v105 = vld [vmem:[%s100 + $0x4] sm:$0x1]
  %v106 = vld [vmem:[%s100 + $0x5] sm:$0x1]
  %v107 = vld [vmem:[%s100 + $0x6] sm:$0x1]
  %v108 = vld [vmem:[%s100 + $0x7] sm:$0x1]
  %v109 = vmul.f32 %v99, %v101
  %v110 = vmul.f32 %v99, %v102
  %v111 = vmul.f32 %v99, %v103
  %v112 = vmul.f32 %v99, %v104
  %v113 = vmul.f32 %v99, %v105
  %v114 = vmul.f32 %v99, %v106
  %v115 = vmul.f32 %v99, %v107
  %v116 = vmul.f32 %v99, %v108
  %s117 = scalar_lea.vmem %s55, 3
  %v118 = vld [vmem:[%s117] sm:$0x1]
  %s119 = scalar_lea.vmem %s4, 24
  %v120 = vld [vmem:[%s119] sm:$0x1]
  %v121 = vld [vmem:[%s119 + $0x1] sm:$0x1]
  %v122 = vld [vmem:[%s119 + $0x2] sm:$0x1]
  %v123 = vld [vmem:[%s119 + $0x3] sm:$0x1]
  %v124 = vld [vmem:[%s119 + $0x4] sm:$0x1]
  %v125 = vld [vmem:[%s119 + $0x5] sm:$0x1]
  %v126 = vld [vmem:[%s119 + $0x6] sm:$0x1]
  %v127 = vld [vmem:[%s119 + $0x7] sm:$0x1]
  %v128 = vmul.f32 %v118, %v120
  %v129 = vmul.f32 %v118, %v121
  %v130 = vmul.f32 %v118, %v122
  %v131 = vmul.f32 %v118, %v123
  %v132 = vmul.f32 %v118, %v124
  %v133 = vmul.f32 %v118, %v125
  %v134 = vmul.f32 %v118, %v126
  %v135 = vmul.f32 %v118, %v127
  %s136 = scalar_lea.vmem %s55, 4
  %v137 = vld [vmem:[%s136] sm:$0x1]
  %s138 = scalar_lea.vmem %s4, 32
  %v139 = vld [vmem:[%s138] sm:$0x1]
  %v140 = vld [vmem:[%s138 + $0x1] sm:$0x1]
  %v141 = vld [vmem:[%s138 + $0x2] sm:$0x1]
  %v142 = vld [vmem:[%s138 + $0x3] sm:$0x1]
  %v143 = vld [vmem:[%s138 + $0x4] sm:$0x1]
  %v144 = vld [vmem:[%s138 + $0x5] sm:$0x1]
  %v145 = vld [vmem:[%s138 + $0x6] sm:$0x1]
  %v146 = vld [vmem:[%s138 + $0x7] sm:$0x1]
  %v147 = vmul.f32 %v137, %v139
  %v148 = vmul.f32 %v137, %v140
  %v149 = vmul.f32 %v137, %v141
  %v150 = vmul.f32 %v137, %v142
  %v151 = vmul.f32 %v137, %v143
  %v152 = vmul.f32 %v137, %v144
  %v153 = vmul.f32 %v137, %v145
  %v154 = vmul.f32 %v137, %v146
  %v155 = vadd.f32 %v71, %v147
  %v156 = vadd.f32 %v72, %v148
  %v157 = vadd.f32 %v73, %v149
  %v158 = vadd.f32 %v74, %v150
  %v159 = vadd.f32 %v75, %v151
  %v160 = vadd.f32 %v76, %v152
  %v161 = vadd.f32 %v77, %v153
  %v162 = vadd.f32 %v78, %v154
  %s163 = scalar_lea.vmem %s55, 5
  %v164 = vld [vmem:[%s163] sm:$0x1]
  %s165 = scalar_lea.vmem %s4, 40
  %v166 = vld [vmem:[%s165] sm:$0x1]
  %v167 = vld [vmem:[%s165 + $0x1] sm:$0x1]
  %v168 = vld [vmem:[%s165 + $0x2] sm:$0x1]
  %v169 = vld [vmem:[%s165 + $0x3] sm:$0x1]
  %v170 = vld [vmem:[%s165 + $0x4] sm:$0x1]
  %v171 = vld [vmem:[%s165 + $0x5] sm:$0x1]
  %v172 = vld [vmem:[%s165 + $0x6] sm:$0x1]
  %v173 = vld [vmem:[%s165 + $0x7] sm:$0x1]
  %v174 = vmul.f32 %v164, %v166
  %v175 = vmul.f32 %v164, %v167
  %v176 = vmul.f32 %v164, %v168
  %v177 = vmul.f32 %v164, %v169
  %v178 = vmul.f32 %v164, %v170
  %v179 = vmul.f32 %v164, %v171
  %v180 = vmul.f32 %v164, %v172
  %v181 = vmul.f32 %v164, %v173
  %v182 = vadd.f32 %v90, %v174
  %v183 = vadd.f32 %v91, %v175
  %v184 = vadd.f32 %v92, %v176
  %v185 = vadd.f32 %v93, %v177
  %v186 = vadd.f32 %v94, %v178
  %v187 = vadd.f32 %v95, %v179
  %v188 = vadd.f32 %v96, %v180
  %v189 = vadd.f32 %v97, %v181
  %s190 = scalar_lea.vmem %s55, 6
  %v191 = vld [vmem:[%s190] sm:$0x1]
  %s192 = scalar_lea.vmem %s4, 48
  %v193 = vld [vmem:[%s192] sm:$0x1]
  %v194 = vld [vmem:[%s192 + $0x1] sm:$0x1]
  %v195 = vld [vmem:[%s192 + $0x2] sm:$0x1]
  %v196 = vld [vmem:[%s192 + $0x3] sm:$0x1]
  %v197 = vld [vmem:[%s192 + $0x4] sm:$0x1]
  %v198 = vld [vmem:[%s192 + $0x5] sm:$0x1]
  %v199 = vld [vmem:[%s192 + $0x6] sm:$0x1]
  %v200 = vld [vmem:[%s192 + $0x7] sm:$0x1]
  %v201 = vmul.f32 %v191, %v193
  %v202 = vmul.f32 %v191, %v194
  %v203 = vmul.f32 %v191, %v195
  %v204 = vmul.f32 %v191, %v196
  %v205 = vmul.f32 %v191, %v197
  %v206 = vmul.f32 %v191, %v198
  %v207 = vmul.f32 %v191, %v199
  %v208 = vmul.f32 %v191, %v200
  %v209 = vadd.f32 %v109, %v201
  %v210 = vadd.f32 %v110, %v202
  %v211 = vadd.f32 %v111, %v203
  %v212 = vadd.f32 %v112, %v204
  %v213 = vadd.f32 %v113, %v205
  %v214 = vadd.f32 %v114, %v206
  %v215 = vadd.f32 %v115, %v207
  %v216 = vadd.f32 %v116, %v208
  %s217 = scalar_lea.vmem %s55, 7
  %v218 = vld [vmem:[%s217] sm:$0x1]
  %s219 = scalar_lea.vmem %s4, 56
  %v220 = vld [vmem:[%s219] sm:$0x1]
  %v221 = vld [vmem:[%s219 + $0x1] sm:$0x1]
  %v222 = vld [vmem:[%s219 + $0x2] sm:$0x1]
  %v223 = vld [vmem:[%s219 + $0x3] sm:$0x1]
  %v224 = vld [vmem:[%s219 + $0x4] sm:$0x1]
  %v225 = vld [vmem:[%s219 + $0x5] sm:$0x1]
  %v226 = vld [vmem:[%s219 + $0x6] sm:$0x1]
  %v227 = vld [vmem:[%s219 + $0x7] sm:$0x1]
  %v228 = vmul.f32 %v218, %v220
  %v229 = vmul.f32 %v218, %v221
  %v230 = vmul.f32 %v218, %v222
  %v231 = vmul.f32 %v218, %v223
  %v232 = vmul.f32 %v218, %v224
  %v233 = vmul.f32 %v218, %v225
  %v234 = vmul.f32 %v218, %v226
  %v235 = vmul.f32 %v218, %v227
  %v236 = vadd.f32 %v128, %v228
  %v237 = vadd.f32 %v129, %v229
  %v238 = vadd.f32 %v130, %v230
  %v239 = vadd.f32 %v131, %v231
  %v240 = vadd.f32 %v132, %v232
  %v241 = vadd.f32 %v133, %v233
  %v242 = vadd.f32 %v134, %v234
  %v243 = vadd.f32 %v135, %v235
  %v244 = vld [vmem:[%s50] sm:$0x1]
  %v245 = vld [vmem:[%s2] sm:$0x1]
  %v246 = vmul.f32 %v244, %v245
  %v247 = vld [vmem:[%s3] sm:$0x1]
  %v248 = vadd.f32 %v246, %v247
  %v249 = vmax.f32 %v248, 0.0
  %s250 = scalar_lea.vmem %s4, 64
  %v251 = vld [vmem:[%s250] sm:$0x1]
  %v252 = vld [vmem:[%s250 + $0x1] sm:$0x1]
  %v253 = vld [vmem:[%s250 + $0x2] sm:$0x1]
  %v254 = vld [vmem:[%s250 + $0x3] sm:$0x1]
  %v255 = vld [vmem:[%s250 + $0x4] sm:$0x1]
  %v256 = vld [vmem:[%s250 + $0x5] sm:$0x1]
  %v257 = vld [vmem:[%s250 + $0x6] sm:$0x1]
  %v258 = vld [vmem:[%s250 + $0x7] sm:$0x1]
  %v259 = vmul.f32 %v249, %v251
  %v260 = vmul.f32 %v249, %v252
  %v261 = vmul.f32 %v249, %v253
  %v262 = vmul.f32 %v249, %v254
  %v263 = vmul.f32 %v249, %v255
  %v264 = vmul.f32 %v249, %v256
  %v265 = vmul.f32 %v249, %v257
  %v266 = vmul.f32 %v249, %v258
  %v267 = vadd.f32 %v155, %v259
  %v268 = vadd.f32 %v156, %v260
  %v269 = vadd.f32 %v157, %v261
  %v270 = vadd.f32 %v158, %v262
  %v271 = vadd.f32 %v159, %v263
  %v272 = vadd.f32 %v160, %v264
  %v273 = vadd.f32 %v161, %v265
  %v274 = vadd.f32 %v162, %v266
  %s275 = scalar_lea.vmem %s50, 1
  %v276 = vld [vmem:[%s275] sm:$0x1]
  %s277 = scalar_lea.vmem %s2, 1
  %v278 = vld [vmem:[%s277] sm:$0x1]
  %v279 = vmul.f32 %v276, %v278
  %s280 = scalar_lea.vmem %s3, 1
  %v281 = vld [vmem:[%s280] sm:$0x1]
  %v282 = vadd.f32 %v279, %v281
  %v283 = vmax.f32 %v282, 0.0
  %s284 = scalar_lea.vmem %s4, 72
  %v285 = vld [vmem:[%s284] sm:$0x1]
  %v286 = vld [vmem:[%s284 + $0x1] sm:$0x1]
  %v287 = vld [vmem:[%s284 + $0x2] sm:$0x1]
  %v288 = vld [vmem:[%s284 + $0x3] sm:$0x1]
  %v289 = vld [vmem:[%s284 + $0x4] sm:$0x1]
  %v290 = vld [vmem:[%s284 + $0x5] sm:$0x1]
  %v291 = vld [vmem:[%s284 + $0x6] sm:$0x1]
  %v292 = vld [vmem:[%s284 + $0x7] sm:$0x1]
  %v293 = vmul.f32 %v283, %v285
  %v294 = vmul.f32 %v283, %v286
  %v295 = vmul.f32 %v283, %v287
  %v296 = vmul.f32 %v283, %v288
  %v297 = vmul.f32 %v283, %v289
  %v298 = vmul.f32 %v283, %v290
  %v299 = vmul.f32 %v283, %v291
  %v300 = vmul.f32 %v283, %v292
  %v301 = vadd.f32 %v182, %v293
  %v302 = vadd.f32 %v183, %v294
  %v303 = vadd.f32 %v184, %v295
  %v304 = vadd.f32 %v185, %v296
  %v305 = vadd.f32 %v186, %v297
  %v306 = vadd.f32 %v187, %v298
  %v307 = vadd.f32 %v188, %v299
  %v308 = vadd.f32 %v189, %v300
  %s309 = scalar_lea.vmem %s50, 2
  %v310 = vld [vmem:[%s309] sm:$0x1]
  %s311 = scalar_lea.vmem %s2, 2
  %v312 = vld [vmem:[%s311] sm:$0x1]
  %v313 = vmul.f32 %v310, %v312
  %s314 = scalar_lea.vmem %s3, 2
  %v315 = vld [vmem:[%s314] sm:$0x1]
  %v316 = vadd.f32 %v313, %v315
  %v317 = vmax.f32 %v316, 0.0
  %s318 = scalar_lea.vmem %s4, 80
  %v319 = vld [vmem:[%s318] sm:$0x1]
  %v320 = vld [vmem:[%s318 + $0x1] sm:$0x1]
  %v321 = vld [vmem:[%s318 + $0x2] sm:$0x1]
  %v322 = vld [vmem:[%s318 + $0x3] sm:$0x1]
  %v323 = vld [vmem:[%s318 + $0x4] sm:$0x1]
  %v324 = vld [vmem:[%s318 + $0x5] sm:$0x1]
  %v325 = vld [vmem:[%s318 + $0x6] sm:$0x1]
  %v326 = vld [vmem:[%s318 + $0x7] sm:$0x1]
  %v327 = vmul.f32 %v317, %v319
  %v328 = vmul.f32 %v317, %v320
  %v329 = vmul.f32 %v317, %v321
  %v330 = vmul.f32 %v317, %v322
  %v331 = vmul.f32 %v317, %v323
  %v332 = vmul.f32 %v317, %v324
  %v333 = vmul.f32 %v317, %v325
  %v334 = vmul.f32 %v317, %v326
  %v335 = vadd.f32 %v209, %v327
  %v336 = vadd.f32 %v210, %v328
  %v337 = vadd.f32 %v211, %v329
  %v338 = vadd.f32 %v212, %v330
  %v339 = vadd.f32 %v213, %v331
  %v340 = vadd.f32 %v214, %v332
  %v341 = vadd.f32 %v215, %v333
  %v342 = vadd.f32 %v216, %v334
  %s343 = scalar_lea.vmem %s50, 3
  %v344 = vld [vmem:[%s343] sm:$0x1]
  %s345 = scalar_lea.vmem %s2, 3
  %v346 = vld [vmem:[%s345] sm:$0x1]
  %v347 = vmul.f32 %v344, %v346
  %s348 = scalar_lea.vmem %s3, 3
  %v349 = vld [vmem:[%s348] sm:$0x1]
  %v350 = vadd.f32 %v347, %v349
  %v351 = vmax.f32 %v350, 0.0
  %s352 = scalar_lea.vmem %s4, 88
  %v353 = vld [vmem:[%s352] sm:$0x1]
  %v354 = vld [vmem:[%s352 + $0x1] sm:$0x1]
  %v355 = vld [vmem:[%s352 + $0x2] sm:$0x1]
  %v356 = vld [vmem:[%s352 + $0x3] sm:$0x1]
  %v357 = vld [vmem:[%s352 + $0x4] sm:$0x1]
  %v358 = vld [vmem:[%s352 + $0x5] sm:$0x1]
  %v359 = vld [vmem:[%s352 + $0x6] sm:$0x1]
  %v360 = vld [vmem:[%s352 + $0x7] sm:$0x1]
  %v361 = vmul.f32 %v351, %v353
  %v362 = vmul.f32 %v351, %v354
  %v363 = vmul.f32 %v351, %v355
  %v364 = vmul.f32 %v351, %v356
  %v365 = vmul.f32 %v351, %v357
  %v366 = vmul.f32 %v351, %v358
  %v367 = vmul.f32 %v351, %v359
  %v368 = vmul.f32 %v351, %v360
  %v369 = vadd.f32 %v236, %v361
  %v370 = vadd.f32 %v237, %v362
  %v371 = vadd.f32 %v238, %v363
  %v372 = vadd.f32 %v239, %v364
  %v373 = vadd.f32 %v240, %v365
  %v374 = vadd.f32 %v241, %v366
  %v375 = vadd.f32 %v242, %v367
  %v376 = vadd.f32 %v243, %v368
  %s377 = scalar_lea.vmem %s50, 4
  %v378 = vld [vmem:[%s377] sm:$0x1]
  %s379 = scalar_lea.vmem %s2, 4
  %v380 = vld [vmem:[%s379] sm:$0x1]
  %v381 = vmul.f32 %v378, %v380
  %s382 = scalar_lea.vmem %s3, 4
  %v383 = vld [vmem:[%s382] sm:$0x1]
  %v384 = vadd.f32 %v381, %v383
  %v385 = vmax.f32 %v384, 0.0
  %s386 = scalar_lea.vmem %s4, 96
  %v387 = vld [vmem:[%s386] sm:$0x1]
  %v388 = vld [vmem:[%s386 + $0x1] sm:$0x1]
  %v389 = vld [vmem:[%s386 + $0x2] sm:$0x1]
  %v390 = vld [vmem:[%s386 + $0x3] sm:$0x1]
  %v391 = vld [vmem:[%s386 + $0x4] sm:$0x1]
  %v392 = vld [vmem:[%s386 + $0x5] sm:$0x1]
  %v393 = vld [vmem:[%s386 + $0x6] sm:$0x1]
  %v394 = vld [vmem:[%s386 + $0x7] sm:$0x1]
  %v395 = vmul.f32 %v385, %v387
  %v396 = vmul.f32 %v385, %v388
  %v397 = vmul.f32 %v385, %v389
  %v398 = vmul.f32 %v385, %v390
  %v399 = vmul.f32 %v385, %v391
  %v400 = vmul.f32 %v385, %v392
  %v401 = vmul.f32 %v385, %v393
  %v402 = vmul.f32 %v385, %v394
  %v403 = vadd.f32 %v267, %v395
  %v404 = vadd.f32 %v268, %v396
  %v405 = vadd.f32 %v269, %v397
  %v406 = vadd.f32 %v270, %v398
  %v407 = vadd.f32 %v271, %v399
  %v408 = vadd.f32 %v272, %v400
  %v409 = vadd.f32 %v273, %v401
  %v410 = vadd.f32 %v274, %v402
  %s411 = scalar_lea.vmem %s50, 5
  %v412 = vld [vmem:[%s411] sm:$0x1]
  %s413 = scalar_lea.vmem %s2, 5
  %v414 = vld [vmem:[%s413] sm:$0x1]
  %v415 = vmul.f32 %v412, %v414
  %s416 = scalar_lea.vmem %s3, 5
  %v417 = vld [vmem:[%s416] sm:$0x1]
  %v418 = vadd.f32 %v415, %v417
  %v419 = vmax.f32 %v418, 0.0
  %s420 = scalar_lea.vmem %s4, 104
  %v421 = vld [vmem:[%s420] sm:$0x1]
  %v422 = vld [vmem:[%s420 + $0x1] sm:$0x1]
  %v423 = vld [vmem:[%s420 + $0x2] sm:$0x1]
  %v424 = vld [vmem:[%s420 + $0x3] sm:$0x1]
  %v425 = vld [vmem:[%s420 + $0x4] sm:$0x1]
  %v426 = vld [vmem:[%s420 + $0x5] sm:$0x1]
  %v427 = vld [vmem:[%s420 + $0x6] sm:$0x1]
  %v428 = vld [vmem:[%s420 + $0x7] sm:$0x1]
  %v429 = vmul.f32 %v419, %v421
  %v430 = vmul.f32 %v419, %v422
  %v431 = vmul.f32 %v419, %v423
  %v432 = vmul.f32 %v419, %v424
  %v433 = vmul.f32 %v419, %v425
  %v434 = vmul.f32 %v419, %v426
  %v435 = vmul.f32 %v419, %v427
  %v436 = vmul.f32 %v419, %v428
  %v437 = vadd.f32 %v301, %v429
  %v438 = vadd.f32 %v302, %v430
  %v439 = vadd.f32 %v303, %v431
  %v440 = vadd.f32 %v304, %v432
  %v441 = vadd.f32 %v305, %v433
  %v442 = vadd.f32 %v306, %v434
  %v443 = vadd.f32 %v307, %v435
  %v444 = vadd.f32 %v308, %v436
  %s445 = scalar_lea.vmem %s50, 6
  %v446 = vld [vmem:[%s445] sm:$0x1]
  %s447 = scalar_lea.vmem %s2, 6
  %v448 = vld [vmem:[%s447] sm:$0x1]
  %v449 = vmul.f32 %v446, %v448
  %s450 = scalar_lea.vmem %s3, 6
  %v451 = vld [vmem:[%s450] sm:$0x1]
  %v452 = vadd.f32 %v449, %v451
  %v453 = vmax.f32 %v452, 0.0
  %s454 = scalar_lea.vmem %s4, 112
  %v455 = vld [vmem:[%s454] sm:$0x1]
  %v456 = vld [vmem:[%s454 + $0x1] sm:$0x1]
  %v457 = vld [vmem:[%s454 + $0x2] sm:$0x1]
  %v458 = vld [vmem:[%s454 + $0x3] sm:$0x1]
  %v459 = vld [vmem:[%s454 + $0x4] sm:$0x1]
  %v460 = vld [vmem:[%s454 + $0x5] sm:$0x1]
  %v461 = vld [vmem:[%s454 + $0x6] sm:$0x1]
  %v462 = vld [vmem:[%s454 + $0x7] sm:$0x1]
  %v463 = vmul.f32 %v453, %v455
  %v464 = vmul.f32 %v453, %v456
  %v465 = vmul.f32 %v453, %v457
  %v466 = vmul.f32 %v453, %v458
  %v467 = vmul.f32 %v453, %v459
  %v468 = vmul.f32 %v453, %v460
  %v469 = vmul.f32 %v453, %v461
  %v470 = vmul.f32 %v453, %v462
  %v471 = vadd.f32 %v335, %v463
  %v472 = vadd.f32 %v336, %v464
  %v473 = vadd.f32 %v337, %v465
  %v474 = vadd.f32 %v338, %v466
  %v475 = vadd.f32 %v339, %v467
  %v476 = vadd.f32 %v340, %v468
  %v477 = vadd.f32 %v341, %v469
  %v478 = vadd.f32 %v342, %v470
  %s479 = scalar_lea.vmem %s50, 7
  %v480 = vld [vmem:[%s479] sm:$0x1]
  %s481 = scalar_lea.vmem %s2, 7
  %v482 = vld [vmem:[%s481] sm:$0x1]
  %v483 = vmul.f32 %v480, %v482
  %s484 = scalar_lea.vmem %s3, 7
  %v485 = vld [vmem:[%s484] sm:$0x1]
  %v486 = vadd.f32 %v483, %v485
  %v487 = vmax.f32 %v486, 0.0
  %s488 = scalar_lea.vmem %s4, 120
  %v489 = vld [vmem:[%s488] sm:$0x1]
  %v490 = vld [vmem:[%s488 + $0x1] sm:$0x1]
  %v491 = vld [vmem:[%s488 + $0x2] sm:$0x1]
  %v492 = vld [vmem:[%s488 + $0x3] sm:$0x1]
  %v493 = vld [vmem:[%s488 + $0x4] sm:$0x1]
  %v494 = vld [vmem:[%s488 + $0x5] sm:$0x1]
  %v495 = vld [vmem:[%s488 + $0x6] sm:$0x1]
  %v496 = vld [vmem:[%s488 + $0x7] sm:$0x1]
  %v497 = vmul.f32 %v487, %v489
  %v498 = vmul.f32 %v487, %v490
  %v499 = vmul.f32 %v487, %v491
  %v500 = vmul.f32 %v487, %v492
  %v501 = vmul.f32 %v487, %v493
  %v502 = vmul.f32 %v487, %v494
  %v503 = vmul.f32 %v487, %v495
  %v504 = vmul.f32 %v487, %v496
  %v505 = vadd.f32 %v369, %v497
  %v506 = vadd.f32 %v370, %v498
  %v507 = vadd.f32 %v371, %v499
  %v508 = vadd.f32 %v372, %v500
  %v509 = vadd.f32 %v373, %v501
  %v510 = vadd.f32 %v374, %v502
  %v511 = vadd.f32 %v375, %v503
  %v512 = vadd.f32 %v376, %v504
  %v513 = vadd.f32 %v403, %v437
  %v514 = vadd.f32 %v404, %v438
  %v515 = vadd.f32 %v405, %v439
  %v516 = vadd.f32 %v406, %v440
  %v517 = vadd.f32 %v407, %v441
  %v518 = vadd.f32 %v408, %v442
  %v519 = vadd.f32 %v409, %v443
  %v520 = vadd.f32 %v410, %v444
  %v521 = vadd.f32 %v513, %v471
  %v522 = vadd.f32 %v514, %v472
  %v523 = vadd.f32 %v515, %v473
  %v524 = vadd.f32 %v516, %v474
  %v525 = vadd.f32 %v517, %v475
  %v526 = vadd.f32 %v518, %v476
  %v527 = vadd.f32 %v519, %v477
  %v528 = vadd.f32 %v520, %v478
  %v529 = vadd.f32 %v521, %v505
  %v530 = vadd.f32 %v522, %v506
  %v531 = vadd.f32 %v523, %v507
  %v532 = vadd.f32 %v524, %v508
  %v533 = vadd.f32 %v525, %v509
  %v534 = vadd.f32 %v526, %v510
  %v535 = vadd.f32 %v527, %v511
  %v536 = vadd.f32 %v528, %v512
  %v537 = vld [vmem:[%s5] sm:$0x1]
  %v538 = vld [vmem:[%s5 + $0x1] sm:$0x1]
  %v539 = vld [vmem:[%s5 + $0x2] sm:$0x1]
  %v540 = vld [vmem:[%s5 + $0x3] sm:$0x1]
  %v541 = vld [vmem:[%s5 + $0x4] sm:$0x1]
  %v542 = vld [vmem:[%s5 + $0x5] sm:$0x1]
  %v543 = vld [vmem:[%s5 + $0x6] sm:$0x1]
  %v544 = vld [vmem:[%s5 + $0x7] sm:$0x1]
  %v545 = vadd.f32 %v529, %v537
  %v546 = vadd.f32 %v530, %v538
  %v547 = vadd.f32 %v531, %v539
  %v548 = vadd.f32 %v532, %v540
  %v549 = vadd.f32 %v533, %v541
  %v550 = vadd.f32 %v534, %v542
  %v551 = vadd.f32 %v535, %v543
  %v552 = vadd.f32 %v536, %v544
  %553 = vst [vmem:[%s60] sm:$0x1] %v545
  %554 = vst [vmem:[%s60 + $0x1] sm:$0x1] %v546
  %555 = vst [vmem:[%s60 + $0x2] sm:$0x1] %v547
  %556 = vst [vmem:[%s60 + $0x3] sm:$0x1] %v548
  %557 = vst [vmem:[%s60 + $0x4] sm:$0x1] %v549
  %558 = vst [vmem:[%s60 + $0x5] sm:$0x1] %v550
  %559 = vst [vmem:[%s60 + $0x6] sm:$0x1] %v551
  %560 = vst [vmem:[%s60 + $0x7] sm:$0x1] %v552
  %p561 = scmp.eq.s32.totalorder 0, 0
  // Predicated region
  $region26: #{side_conv2d.4} parent=0 // pred_check
    %p562 = pneg %p561
  $region27: #{side_conv2d.4} parent=0 // pred_check_branch
    %564 = sbr.rel (%p562) target = $region29
  $region28: #{side_conv2d.4} parent=0 // pred_region
    %565 = vst [vmem:[%s7] sm:$0xff] 0.0
    %566 = vst [vmem:[%s7 + $0x8] sm:$0xff] 0.0
  $region29: #{side_conv2d.4} parent=0 // pred_fallthru
    _
  %v567 = vld [vmem:[%s7] sm:$0xff]
  %v568 = vadd.f32 %v545, 0.0
  %v569 = vadd.f32 %v546, 0.0
  %v570 = vadd.f32 %v547, 0.0
  %v571 = vadd.f32 %v548, 0.0
  %v572 = vadd.f32 %v549, 0.0
  %v573 = vadd.f32 %v550, 0.0
  %v574 = vadd.f32 %v551, 0.0
  %v575 = vadd.f32 %v552, 0.0
  %v584 = vcombine.low %v568, %v569
  %v585 = vcombine.low %v570, %v571
  %v586 = vcombine.low %v572, %v573
  %v587 = vcombine.low %v574, %v575
  %v589 = vunpack.c.l.s4 1966171168
  %v590 = vunpack.c.0.s8 %v589
  %v591 = vlaneseq
  %v592 = vshrl.u32 %v591, 7
  %v593 = vsub.s32 %v590, %v592
  %v594 = vrot.slane %v584, %v593
  %v596 = vunpack.c.l.s4 1966171168
  %v597 = vunpack.c.0.s8 %v596
  %v598 = vlaneseq
  %v599 = vshrl.u32 %v598, 7
  %v600 = vsub.s32 %v597, %v599
  %v601 = vrot.slane %v585, %v600
  %v603 = vunpack.c.l.s4 1966171168
  %v604 = vunpack.c.0.s8 %v603
  %v605 = vlaneseq
  %v606 = vshrl.u32 %v605, 7
  %v607 = vsub.s32 %v604, %v606
  %v608 = vrot.slane %v586, %v607
  %v610 = vunpack.c.l.s4 1966171168
  %v611 = vunpack.c.0.s8 %v610
  %v612 = vlaneseq
  %v613 = vshrl.u32 %v612, 7
  %v614 = vsub.s32 %v611, %v613
  %v615 = vrot.slane %v587, %v614
  %v616 = vcombine.low %v594, %v601
  %v617 = vcombine.low %v608, %v615
  %v619 = vunpack.c.l.s4 1966171168
  %v620 = vunpack.c.0.s8 %v619
  %v621 = vlaneseq
  %v622 = vshrl.u32 %v621, 7
  %v623 = vsub.s32 %v620, %v622
  %v624 = vrot.slane %v616, %v623
  %v626 = vunpack.c.l.s4 1966171168
  %v627 = vunpack.c.0.s8 %v626
  %v628 = vlaneseq
  %v629 = vshrl.u32 %v628, 7
  %v630 = vsub.s32 %v627, %v629
  %v631 = vrot.slane %v617, %v630
  %v632 = vcombine.low %v624, %v631
  %v634 = vadd.f32 %v567, %v632
  %635 = vst [vmem:[%s7] sm:$0xff] %v634
  %s636 = scalar_lea.vmem %s7, 8
  %v637 = vld [vmem:[%s636] sm:$0xff]
  %v638 = vmul.f32 %v545, %v545
  %v639 = vmul.f32 %v546, %v546
  %v640 = vmul.f32 %v547, %v547
  %v641 = vmul.f32 %v548, %v548
  %v642 = vmul.f32 %v549, %v549
  %v643 = vmul.f32 %v550, %v550
  %v644 = vmul.f32 %v551, %v551
  %v645 = vmul.f32 %v552, %v552
  %v646 = vadd.f32 %v638, 0.0
  %v647 = vadd.f32 %v639, 0.0
  %v648 = vadd.f32 %v640, 0.0
  %v649 = vadd.f32 %v641, 0.0
  %v650 = vadd.f32 %v642, 0.0
  %v651 = vadd.f32 %v643, 0.0
  %v652 = vadd.f32 %v644, 0.0
  %v653 = vadd.f32 %v645, 0.0
  %v662 = vcombine.low %v646, %v647
  %v663 = vcombine.low %v648, %v649
  %v664 = vcombine.low %v650, %v651
  %v665 = vcombine.low %v652, %v653
  %v667 = vunpack.c.l.s4 1966171168
  %v668 = vunpack.c.0.s8 %v667
  %v669 = vlaneseq
  %v670 = vshrl.u32 %v669, 7
  %v671 = vsub.s32 %v668, %v670
  %v672 = vrot.slane %v662, %v671
  %v674 = vunpack.c.l.s4 1966171168
  %v675 = vunpack.c.0.s8 %v674
  %v676 = vlaneseq
  %v677 = vshrl.u32 %v676, 7
  %v678 = vsub.s32 %v675, %v677
  %v679 = vrot.slane %v663, %v678
  %v681 = vunpack.c.l.s4 1966171168
  %v682 = vunpack.c.0.s8 %v681
  %v683 = vlaneseq
  %v684 = vshrl.u32 %v683, 7
  %v685 = vsub.s32 %v682, %v684
  %v686 = vrot.slane %v664, %v685
  %v688 = vunpack.c.l.s4 1966171168
  %v689 = vunpack.c.0.s8 %v688
  %v690 = vlaneseq
  %v691 = vshrl.u32 %v690, 7
  %v692 = vsub.s32 %v689, %v691
  %v693 = vrot.slane %v665, %v692
  %v694 = vcombine.low %v672, %v679
  %v695 = vcombine.low %v686, %v693
  %v697 = vunpack.c.l.s4 1966171168
  %v698 = vunpack.c.0.s8 %v697
  %v699 = vlaneseq
  %v700 = vshrl.u32 %v699, 7
  %v701 = vsub.s32 %v698, %v700
  %v702 = vrot.slane %v694, %v701
  %v704 = vunpack.c.l.s4 1966171168
  %v705 = vunpack.c.0.s8 %v704
  %v706 = vlaneseq
  %v707 = vshrl.u32 %v706, 7
  %v708 = vsub.s32 %v705, %v707
  %v709 = vrot.slane %v695, %v708
  %v710 = vcombine.low %v702, %v709
  %v712 = vadd.f32 %v637, %v710
  %713 = vst [vmem:[%s636] sm:$0xff] %v712
  %s714 = sadd.s32 0, 0
  %p715 = scmp.lt.s32.totalorder %s714, 0
  %s716 = scalar_select %p715, %s714, 0
  %s717 = scalar_lea.vmem %s6, %s716
  // Predicated region
  $region30: #{side_conv2d.4} parent=0 // pred_check
    _
  $region31: #{side_conv2d.4} parent=0 // pred_check_branch
    %719 = sbr.rel (0) target = $region33
  $region32: #{side_conv2d.4} parent=0 // pred_region
    %s720 = sadd.s32 0, 0
  $region33: #{side_conv2d.4} parent=0 // pred_fallthru
    _
  // Predicated region
  $region34: #{side_conv2d.4} parent=0 // pred_check
    _
  $region35: #{side_conv2d.4} parent=0 // pred_check_branch
    %722 = sbr.rel (0) target = $region37
  $region36: #{side_conv2d.4} parent=0 // pred_region
    _
  $region37: #{side_conv2d.4} parent=0 // pred_fallthru
    _
  // Predicated region
  $region38: #{side_conv2d.4} parent=0 // pred_check
    _
  $region39: #{side_conv2d.4} parent=0 // pred_check_branch
    %724 = sbr.rel (0) target = $region41
  $region40: #{side_conv2d.4} parent=0 // pred_region
    %s725 = sadd.s32 0, 0
    %p726 = scmp.lt.s32.totalorder %s725, 0
    %s727 = scalar_select %p726, %s725, 0
    %s728 = scalar_lea.vmem %s6, %s727
  $region41: #{side_conv2d.4} parent=0 // pred_fallthru
    _
  // Predicated region
  $region42: #{side_conv2d.4} parent=0 // pred_check
    _
  $region43: #{side_conv2d.4} parent=0 // pred_check_branch
    %730 = sbr.rel (0) target = $region45
  $region44: #{side_conv2d.4} parent=0 // pred_region
    _
  $region45: #{side_conv2d.4} parent=0 // pred_fallthru
    _

</llo_original>
